<compile_context>
chip_gen: v6e
topology: v6e:2x2x1
jax: 0.10.0
libtpu: 0.0.40
codegen_flags: <defaults>
</compile_context>

<pallas_src>
import functools

import jax
import jax.numpy as jnp
from jax import lax
from jax.experimental import pallas as pl
from jax.experimental.pallas import tpu as pltpu

LANE = 128


def _round_up(x, m):
    return (x + m - 1) // m * m


def _vmem_estimate(TT, BB, X, Hp, Cp):
    """Rough VMEM footprint (bytes) of pipeline buffers + weights + scratch."""
    x_bufs = 2 * TT * BB * max(X, LANE) * 2          # bf16 x chunk, double-buffered
    len_bufs = 2 * BB * LANE * 4                     # int32 lengths (lane padded)
    out_bufs = 2 * BB * Cp * 4                       # f32 logits block
    weights = (max(8, X) * 4 * Hp * 2                # W_ih bf16
               + 8 * 4 * Hp * 4                      # b f32 (sublane padded)
               + Hp * 4 * Hp * 2                     # W_hh bf16
               + Hp * Cp * 2                         # W_out bf16
               + 8 * Cp * 4)                         # b_out f32
    scratch = TT * BB * 4 * Hp * 4 + 2 * BB * Hp * 4  # gx chunk + h + c
    return x_bufs + len_bufs + out_bufs + weights + scratch


def _lstm_kernel(blkmax_ref,            # SMEM (nb,) int32 (scalar prefetch)
                 x_ref,                 # (TT, BB, X) bf16  embedded inputs
                 len_ref,               # (BB, 1) int32
                 wih_ref,               # (X, 4Hp) bf16   VMEM resident
                 b_ref,                 # (1, 4Hp) f32    VMEM resident
                 whh_ref,               # (Hp, 4Hp) bf16  VMEM resident
                 wout_ref,              # (Hp, Cp) bf16   VMEM resident
                 bout_ref,              # (1, Cp) f32     VMEM resident
                 out_ref,               # (BB, Cp) f32
                 gx_sc,                 # (TT*BB, 4Hp) f32 scratch
                 h_sc, c_sc,            # (BB, Hp) f32 scratch (resident)
                 *, bf16_gates, unroll):
    bi = pl.program_id(0)               # batch-block index ("parallel")
    ti = pl.program_id(1)               # time-chunk index (sequential)
    TT, BB, X = x_ref.shape
    Hp = h_sc.shape[-1]

    @pl.when(ti == 0)
    def _():
        h_sc[...] = jnp.zeros_like(h_sc)
        c_sc[...] = jnp.zeros_like(c_sc)

    t0 = ti * TT

    # Skip time chunks that lie entirely past this batch block's longest seq.
    @pl.when(t0 < blkmax_ref[bi])
    def _():
        # Fused input projection for the whole chunk: one big MXU matmul,
        # off the serial recurrence path.
        x2d = x_ref[...].reshape(TT * BB, X)
        gx_sc[...] = (jnp.dot(x2d, wih_ref[...],
                              preferred_element_type=jnp.float32)
                      + b_ref[...])

        lens = len_ref[...]                           # (BB, 1) int32
        whh = whh_ref[...]                            # (Hp, 4Hp) bf16

        def step(i, carry):
            h_prev, c_prev = carry
            row0 = pl.multiple_of(i * BB, BB)
            # Only the h-recurrence matmul stays on the serial path.
            gates = gx_sc[pl.ds(row0, BB), :] + jnp.dot(
                h_prev.astype(jnp.bfloat16), whh,
                preferred_element_type=jnp.float32)
            # bf16 transcendentals on v6e/v7x (EUP bf16 path); f32 on v5e.
            g = gates.astype(jnp.bfloat16) if bf16_gates else gates
            # PyTorch gate order [i, f, g, o]; Hp multiple of 128 -> lane-aligned.
            i_g = jax.nn.sigmoid(g[:, 0 * Hp:1 * Hp]).astype(jnp.float32)
            f_g = jax.nn.sigmoid(g[:, 1 * Hp:2 * Hp]).astype(jnp.float32)
            g_g = jnp.tanh(g[:, 2 * Hp:3 * Hp]).astype(jnp.float32)
            o_g = jax.nn.sigmoid(g[:, 3 * Hp:4 * Hp]).astype(jnp.float32)
            c_new = f_g * c_prev + i_g * g_g
            h_new = o_g * jnp.tanh(c_new)
            # packed-sequence masking: freeze state once t >= lengths[b]
            upd = (t0 + i) < lens                      # (BB, 1) bool
            return (jnp.where(upd, h_new, h_prev),
                    jnp.where(upd, c_new, c_prev))

        h, c = lax.fori_loop(0, TT, step, (h_sc[...], c_sc[...]),
                             unroll=unroll)
        h_sc[...] = h
        c_sc[...] = c

    @pl.when(ti == pl.num_programs(1) - 1)
    def _():
        # Fused final linear; Cp is a multiple of 128 -> lane-dense store.
        logits = (jnp.dot(h_sc[...].astype(jnp.bfloat16), wout_ref[...],
                          preferred_element_type=jnp.float32) + bout_ref[...])
        out_ref[...] = logits.astype(out_ref.dtype)


def lstm_forward(wordid, lengths, params, *, time_block=16, batch_block=None,
                 unroll=8):
    """wordid: (B, T) int32, lengths: (B,) int32 -> logits (B, C) f32."""
    emb = params["embedding"]            # (V, X)
    w_ih = params["w_ih"]                # (X, 4H)   (transposed torch weight_ih)
    w_hh = params["w_hh"]                # (H, 4H)   (transposed torch weight_hh)
    b = params["b"]                      # (1, 4H)   (b_ih + b_hh)
    w_out = params["w_out"]              # (H, C)    (transposed torch linear weight)
    b_out = params["b_out"]              # (1, C)

    B, T = wordid.shape
    X = emb.shape[1]
    H = w_hh.shape[0]
    C = w_out.shape[1]

    Hp = _round_up(H, LANE)              # lane-aligned gate slices
    Cp = _round_up(C, LANE)              # lane-dense logits

    # ---- hardware-aware block sizing -------------------------------------
    try:
        dk = jax.devices()[0].device_kind.lower()
    except Exception:  # pragma: no cover
        dk = ""
    old_gen = any(s in dk for s in ("v2", "v3", "v4", "v5"))
    is_v7 = ("v7" in dk) or ("tpu7" in dk)
    bf16_gates = not old_gen

    if batch_block is None:
        cap = 128 if old_gen else 256
        BB = min(_round_up(B, 8), cap)
        # v7x: keep >=2 blocks on the "parallel" batch axis for the 2nd TC.
        if is_v7 and B >= 16 and _round_up(B, BB) // BB < 2:
            BB = max(8, _round_up((B + 1) // 2, 8))
    else:
        BB = max(8, _round_up(batch_block, 8))

    TT = max(1, min(time_block, T))

    # Fit the tile into a budget that also works on v7x's 64 MiB VMEM.
    budget = 48 * 2**20
    while _vmem_estimate(TT, BB, X, Hp, Cp) > budget and TT > 4:
        TT = max(4, TT // 2)
    while _vmem_estimate(TT, BB, X, Hp, Cp) > budget and BB > 8:
        BB = max(8, _round_up(BB // 2, 8))
    est = _vmem_estimate(TT, BB, X, Hp, Cp)
    vmem_cap = (60 if is_v7 else 120) * 2**20
    vmem_limit = int(min(max(1.25 * est, 32 * 2**20), vmem_cap))

    Tp = _round_up(T, TT)
    Bp = _round_up(B, BB)
    nb = Bp // BB
    nt = Tp // TT

    # ---- parameter padding (zero padding keeps padded units exactly 0) ----
    def pad_gate_cols(w):
        # (rows, 4H) -> (rows, 4Hp): each of the i/f/g/o blocks starts at a
        # multiple of Hp.
        r = w.shape[0]
        return jnp.pad(w.reshape(r, 4, H),
                       ((0, 0), (0, 0), (0, Hp - H))).reshape(r, 4 * Hp)

    w_ih_p = pad_gate_cols(w_ih)                                    # (X, 4Hp)
    w_hh_p = jnp.pad(pad_gate_cols(w_hh), ((0, Hp - H), (0, 0)))    # (Hp, 4Hp)
    b_p = pad_gate_cols(b)                                          # (1, 4Hp)
    w_out_p = jnp.pad(w_out, ((0, Hp - H), (0, Cp - C)))            # (Hp, Cp)
    b_out_p = jnp.pad(b_out, ((0, 0), (0, Cp - C)))                 # (1, Cp)

    # ---- XLA glue: embedding gather (dropout = identity in eval) ----------
    # Gather directly time-major so no big activation transpose is needed.
    x = emb.astype(jnp.bfloat16)[wordid.T]                          # (T, B, X)
    x = jnp.pad(x, ((0, Tp - T), (0, Bp - B), (0, 0)))              # (Tp, Bp, X)

    lens_p = jnp.pad(lengths.astype(jnp.int32), (0, Bp - B))        # (Bp,)
    len2d = lens_p.reshape(Bp, 1)
    blk_max = lens_p.reshape(nb, BB).max(axis=1).astype(jnp.int32)  # (nb,)

    kernel = functools.partial(_lstm_kernel,
                               bf16_gates=bf16_gates,
                               unroll=max(1, min(unroll, TT)))

    # Whole-array VMEM specs: copied once, not double-buffered per grid step.
    vmem_full = pl.BlockSpec(memory_space=pltpu.MemorySpace.VMEM)

    out = pl.pallas_call(
        kernel,
        out_shape=jax.ShapeDtypeStruct((Bp, Cp), jnp.float32),
        grid_spec=pltpu.PrefetchScalarGridSpec(
            num_scalar_prefetch=1,
            grid=(nb, nt),                      # (batch blocks, time chunks)
            in_specs=[
                pl.BlockSpec((TT, BB, X), lambda bi, ti, bm: (ti, bi, 0)),
                pl.BlockSpec((BB, 1), lambda bi, ti, bm: (bi, 0)),
                vmem_full,                      # W_ih  (X, 4Hp) bf16
                vmem_full,                      # b     (1, 4Hp) f32
                vmem_full,                      # W_hh  (Hp, 4Hp) bf16
                vmem_full,                      # W_out (Hp, Cp) bf16
                vmem_full,                      # b_out (1, Cp) f32
            ],
            out_specs=pl.BlockSpec((BB, Cp), lambda bi, ti, bm: (bi, 0)),
            scratch_shapes=[
                pltpu.VMEM((TT * BB, 4 * Hp), jnp.float32),  # chunk pre-acts
                pltpu.VMEM((BB, Hp), jnp.float32),           # h state
                pltpu.VMEM((BB, Hp), jnp.float32),           # c state
            ]),
        compiler_params=pltpu.CompilerParams(
            # batch is embarrassingly parallel (v7x second TC); time must stay
            # "arbitrary" (sequential) for the recurrence / resident scratch.
            dimension_semantics=("parallel", "arbitrary"),
            vmem_limit_bytes=vmem_limit),
    )(blk_max, x, len2d,
      w_ih_p.astype(jnp.bfloat16), b_p,
      w_hh_p.astype(jnp.bfloat16), w_out_p.astype(jnp.bfloat16), b_out_p)

    return out[:B, :C]


def reference_forward(wordid, lengths, params):
    """Pure-JAX f32 reference matching PyTorch semantics (eval-mode dropout)."""
    emb = params["embedding"]
    x = emb[wordid].astype(jnp.float32)                 # (B, T, X)
    B, T, _ = x.shape
    H = params["w_hh"].shape[0]

    def step(carry, inp):
        h, c = carry
        x_t, t = inp
        gates = x_t @ params["w_ih"] + h @ params["w_hh"] + params["b"]
        i_g = jax.nn.sigmoid(gates[:, 0 * H:1 * H])
        f_g = jax.nn.sigmoid(gates[:, 1 * H:2 * H])
        g_g = jnp.tanh(gates[:, 2 * H:3 * H])
        o_g = jax.nn.sigmoid(gates[:, 3 * H:4 * H])
        c_new = f_g * c + i_g * g_g
        h_new = o_g * jnp.tanh(c_new)
        mask = (t < lengths)[:, None]
        h = jnp.where(mask, h_new, h)
        c = jnp.where(mask, c_new, c)
        return (h, c), None

    h0 = jnp.zeros((B, H), jnp.float32)
    c0 = jnp.zeros((B, H), jnp.float32)
    (h, _), _ = lax.scan(step, (h0, c0),
                         (jnp.transpose(x, (1, 0, 2)), jnp.arange(T)))
    return h @ params["w_out"] + params["b_out"]


def init_params(key, num_vocabs, x_size, h_size, num_classes):
    ks = jax.random.split(key, 7)
    scale = 1.0 / jnp.sqrt(h_size)
    return {
        "embedding": jax.random.normal(ks[0], (num_vocabs, x_size), jnp.float32),
        "w_ih": jax.random.uniform(ks[1], (x_size, 4 * h_size), jnp.float32,
                                   -scale, scale),
        "w_hh": jax.random.uniform(ks[2], (h_size, 4 * h_size), jnp.float32,
                                   -scale, scale),
        "b": jax.random.uniform(ks[3], (1, 4 * h_size), jnp.float32,
                                -scale, scale)
             + jax.random.uniform(ks[4], (1, 4 * h_size), jnp.float32,
                                  -scale, scale),
        "w_out": jax.random.uniform(ks[5], (h_size, num_classes), jnp.float32,
                                    -scale, scale),
        "b_out": jax.random.uniform(ks[6], (1, num_classes), jnp.float32,
                                    -scale, scale),
    }


if __name__ == "__main__":
    NUM_VOCABS, X_SIZE, H_SIZE, NUM_CLASSES = 100, 32, 32, 8
    B, T = 8, 8

    key = jax.random.PRNGKey(0)
    k_param, k_word = jax.random.split(key)
    params = init_params(k_param, NUM_VOCABS, X_SIZE, H_SIZE, NUM_CLASSES)

    wordid = jax.random.randint(k_word, (B, T), 0, NUM_VOCABS, jnp.int32)
    # pack_padded_sequence expects lengths sorted in decreasing order
    lengths = jnp.array([8, 8, 7, 6, 5, 4, 3, 2], jnp.int32)

    logits = lstm_forward(wordid, lengths, params)
    logits = jax.block_until_ready(logits)

    ref = reference_forward(wordid, lengths, params)
    assert logits.shape == (B, NUM_CLASSES)
    # bf16 matmul operands / bf16 gate activations (f32 state & accumulation)
    # vs pure-f32 reference
    assert jnp.allclose(logits, ref, rtol=5e-2, atol=5e-2), \
        float(jnp.max(jnp.abs(logits - ref)))

    print("KERNEL_OK")
</pallas_src>

<mosaic_0001>
module attributes {stable_mosaic.version = 11 : i64} {
  func.func @_lstm_kernel(%arg0: i32, %arg1: i32, %arg2: memref<1xi32, #tpu.memory_space<smem>>, %arg3: memref<8x8x32xbf16, #tpu.memory_space<vmem>>, %arg4: memref<8x1xi32, #tpu.memory_space<vmem>>, %arg5: memref<32x512xbf16, #tpu.memory_space<vmem>>, %arg6: memref<1x512xf32, #tpu.memory_space<vmem>>, %arg7: memref<128x512xbf16, #tpu.memory_space<vmem>>, %arg8: memref<128x128xbf16, #tpu.memory_space<vmem>>, %arg9: memref<1x128xf32, #tpu.memory_space<vmem>>, %arg10: memref<8x128xf32, #tpu.memory_space<vmem>>, %arg11: memref<64x512xf32, #tpu.memory_space<vmem>>, %arg12: memref<8x128xf32, #tpu.memory_space<vmem>>, %arg13: memref<8x128xf32, #tpu.memory_space<vmem>>) attributes {dimension_semantics = [#tpu.dimension_semantics<parallel>, #tpu.dimension_semantics<arbitrary>], iteration_bounds = array<i64: 1, 1>, scalar_prefetch = 1 : i64, scratch_operands = 3 : i64, tpu.core_type = #tpu.core_type<tc>, window_params = [{transform_indices = @transform_0, window_bounds = array<i64: 8, 8, 32>}, {transform_indices = @transform_1, window_bounds = array<i64: 8, 1>}, {pipeline_mode = #tpu.pipeline_mode<synchronous>, transform_indices = @transform_2, window_bounds = array<i64: 32, 512>}, {pipeline_mode = #tpu.pipeline_mode<synchronous>, transform_indices = @transform_3, window_bounds = array<i64: 1, 512>}, {pipeline_mode = #tpu.pipeline_mode<synchronous>, transform_indices = @transform_4, window_bounds = array<i64: 128, 512>}, {pipeline_mode = #tpu.pipeline_mode<synchronous>, transform_indices = @transform_5, window_bounds = array<i64: 128, 128>}, {pipeline_mode = #tpu.pipeline_mode<synchronous>, transform_indices = @transform_6, window_bounds = array<i64: 1, 128>}, {transform_indices = @transform_7, window_bounds = array<i64: 8, 128>}]} {
    %c0_i32 = arith.constant 0 : i32
    %0 = arith.cmpi eq, %arg1, %c0_i32 : i32
    %1 = arith.extui %0 : i1 to i32
    %c0_i32_0 = arith.constant 0 : i32
    %2 = arith.cmpi ne, %1, %c0_i32_0 : i32
    scf.if %2 {
      %cst = arith.constant 0.000000e+00 : f32
      %12 = vector.broadcast %cst : f32 to vector<8x128xf32>
      %c0 = arith.constant 0 : index
      %c0_4 = arith.constant 0 : index
      %13 = vector.load %arg12[%c0, %c0_4] : memref<8x128xf32, #tpu.memory_space<vmem>>, vector<8x128xf32>
      tpu.vector_store %arg12[%c0, %c0_4], %12 {strides = array<i32>} : memref<8x128xf32, #tpu.memory_space<vmem>>, vector<8x128xf32>,
      %cst_5 = arith.constant 0.000000e+00 : f32
      %14 = vector.broadcast %cst_5 : f32 to vector<8x128xf32>
      %c0_6 = arith.constant 0 : index
      %c0_7 = arith.constant 0 : index
      %15 = vector.load %arg13[%c0_6, %c0_7] : memref<8x128xf32, #tpu.memory_space<vmem>>, vector<8x128xf32>
      tpu.vector_store %arg13[%c0_6, %c0_7], %14 {strides = array<i32>} : memref<8x128xf32, #tpu.memory_space<vmem>>, vector<8x128xf32>,
    } else {
    }
    %c8_i32 = arith.constant 8 : i32
    %3 = arith.muli %arg1, %c8_i32 : i32
    %4 = arith.index_cast %arg0 : i32 to index
    %5 = memref.load %arg2[%4] : memref<1xi32, #tpu.memory_space<smem>>
    %6 = arith.cmpi slt, %3, %5 : i32
    %7 = arith.extui %6 : i1 to i32
    %c0_i32_1 = arith.constant 0 : i32
    %8 = arith.cmpi ne, %7, %c0_i32_1 : i32
    scf.if %8 {
      %c0 = arith.constant 0 : index
      %c0_4 = arith.constant 0 : index
      %c0_5 = arith.constant 0 : index
      %12 = vector.load %arg3[%c0, %c0_4, %c0_5] : memref<8x8x32xbf16, #tpu.memory_space<vmem>>, vector<8x8x32xbf16>
      %13 = vector.shape_cast %12 : vector<8x8x32xbf16> to vector<64x32xbf16>
      %c0_6 = arith.constant 0 : index
      %c0_7 = arith.constant 0 : index
      %14 = vector.load %arg5[%c0_6, %c0_7] : memref<32x512xbf16, #tpu.memory_space<vmem>>, vector<32x512xbf16>
      %cst = arith.constant dense<0.000000e+00> : vector<64x512xf32>
      %15 = tpu.matmul %13, %14, %cst {dimension_numbers = #tpu.dot_dimension_numbers<[1], [0], [0], [1], [0, 0, 1, 1], [], []>} : vector<64x32xbf16>, vector<32x512xbf16>, vector<64x512xf32> -> vector<64x512xf32>
      %c0_8 = arith.constant 0 : index
      %c0_9 = arith.constant 0 : index
      %16 = vector.load %arg6[%c0_8, %c0_9] : memref<1x512xf32, #tpu.memory_space<vmem>>, vector<1x512xf32>
      %17 = vector.broadcast %16 : vector<1x512xf32> to vector<64x512xf32>
      %18 = arith.addf %15, %17 : vector<64x512xf32>
      %c0_10 = arith.constant 0 : index
      %c0_11 = arith.constant 0 : index
      %19 = vector.load %arg11[%c0_10, %c0_11] : memref<64x512xf32, #tpu.memory_space<vmem>>, vector<64x512xf32>
      tpu.vector_store %arg11[%c0_10, %c0_11], %18 {strides = array<i32>} : memref<64x512xf32, #tpu.memory_space<vmem>>, vector<64x512xf32>,
      %c0_12 = arith.constant 0 : index
      %c0_13 = arith.constant 0 : index
      %20 = vector.load %arg4[%c0_12, %c0_13] : memref<8x1xi32, #tpu.memory_space<vmem>>, vector<8x1xi32>
      %c0_14 = arith.constant 0 : index
      %c0_15 = arith.constant 0 : index
      %21 = vector.load %arg7[%c0_14, %c0_15] : memref<128x512xbf16, #tpu.memory_space<vmem>>, vector<128x512xbf16>
      %c0_16 = arith.constant 0 : index
      %c0_17 = arith.constant 0 : index
      %22 = vector.load %arg12[%c0_16, %c0_17] : memref<8x128xf32, #tpu.memory_space<vmem>>, vector<8x128xf32>
      %c0_18 = arith.constant 0 : index
      %c0_19 = arith.constant 0 : index
      %23 = vector.load %arg13[%c0_18, %c0_19] : memref<8x128xf32, #tpu.memory_space<vmem>>, vector<8x128xf32>
      %c0_i32_20 = arith.constant 0 : i32
      %c8_i32_21 = arith.constant 8 : i32
      %24 = arith.muli %c0_i32_20, %c8_i32_21 : i32
      %25 = tpu.assume_multiple %24, 8 : i32
      %26 = arith.index_cast %25 : i32 to index
      %c0_22 = arith.constant 0 : index
      %27 = vector.load %arg11[%26, %c0_22] : memref<64x512xf32, #tpu.memory_space<vmem>>, vector<8x512xf32>
      %28 = arith.truncf %22 : vector<8x128xf32> to vector<8x128xbf16>
      %cst_23 = arith.constant dense<0.000000e+00> : vector<8x512xf32>
      %29 = tpu.matmul %28, %21, %cst_23 {dimension_numbers = #tpu.dot_dimension_numbers<[1], [0], [0], [1], [0, 0, 1, 1], [], []>} : vector<8x128xbf16>, vector<128x512xbf16>, vector<8x512xf32> -> vector<8x512xf32>
      %30 = arith.addf %27, %29 : vector<8x512xf32>
      %31 = arith.truncf %30 : vector<8x512xf32> to vector<8x512xbf16>
      %32 = vector.extract_strided_slice %31 {offsets = [0, 0], sizes = [8, 128], strides = [1, 1]} : vector<8x512xbf16> to vector<8x128xbf16>
      %33 = arith.negf %32 : vector<8x128xbf16>
      %34 = math.exp %33 : vector<8x128xbf16>
      %cst_24 = arith.constant 1.000000e+00 : bf16
      %35 = vector.broadcast %cst_24 : bf16 to vector<8x128xbf16>
      %36 = arith.addf %35, %34 : vector<8x128xbf16>
      %37 = arith.divf %35, %36 : vector<8x128xbf16>
      %38 = arith.extf %37 : vector<8x128xbf16> to vector<8x128xf32>
      %39 = vector.extract_strided_slice %31 {offsets = [0, 128], sizes = [8, 128], strides = [1, 1]} : vector<8x512xbf16> to vector<8x128xbf16>
      %40 = arith.negf %39 : vector<8x128xbf16>
      %41 = math.exp %40 : vector<8x128xbf16>
      %cst_25 = arith.constant 1.000000e+00 : bf16
      %42 = vector.broadcast %cst_25 : bf16 to vector<8x128xbf16>
      %43 = arith.addf %42, %41 : vector<8x128xbf16>
      %44 = arith.divf %42, %43 : vector<8x128xbf16>
      %45 = arith.extf %44 : vector<8x128xbf16> to vector<8x128xf32>
      %46 = vector.extract_strided_slice %31 {offsets = [0, 256], sizes = [8, 128], strides = [1, 1]} : vector<8x512xbf16> to vector<8x128xbf16>
      %47 = math.tanh %46 : vector<8x128xbf16>
      %48 = arith.extf %47 : vector<8x128xbf16> to vector<8x128xf32>
      %49 = vector.extract_strided_slice %31 {offsets = [0, 384], sizes = [8, 128], strides = [1, 1]} : vector<8x512xbf16> to vector<8x128xbf16>
      %50 = arith.negf %49 : vector<8x128xbf16>
      %51 = math.exp %50 : vector<8x128xbf16>
      %cst_26 = arith.constant 1.000000e+00 : bf16
      %52 = vector.broadcast %cst_26 : bf16 to vector<8x128xbf16>
      %53 = arith.addf %52, %51 : vector<8x128xbf16>
      %54 = arith.divf %52, %53 : vector<8x128xbf16>
      %55 = arith.extf %54 : vector<8x128xbf16> to vector<8x128xf32>
      %56 = arith.mulf %45, %23 : vector<8x128xf32>
      %57 = arith.mulf %38, %48 : vector<8x128xf32>
      %58 = arith.addf %56, %57 : vector<8x128xf32>
      %59 = math.tanh %58 : vector<8x128xf32>
      %60 = arith.mulf %55, %59 : vector<8x128xf32>
      %61 = arith.addi %3, %c0_i32_20 : i32
      %62 = vector.broadcast %61 : i32 to vector<8x1xi32>
      %63 = arith.cmpi slt, %62, %20 : vector<8x1xi32>
      %64 = vector.shape_cast %63 : vector<8x1xi1> to vector<8x1xi1>
      %65 = vector.broadcast %64 : vector<8x1xi1> to vector<8x128xi1>
      %66 = arith.select %65, %60, %22 : vector<8x128xi1>, vector<8x128xf32>
      %67 = vector.shape_cast %63 : vector<8x1xi1> to vector<8x1xi1>
      %68 = vector.broadcast %67 : vector<8x1xi1> to vector<8x128xi1>
      %69 = arith.select %68, %58, %23 : vector<8x128xi1>, vector<8x128xf32>
      %c1_i32 = arith.constant 1 : i32
      %c8_i32_27 = arith.constant 8 : i32
      %70 = arith.muli %c1_i32, %c8_i32_27 : i32
      %71 = tpu.assume_multiple %70, 8 : i32
      %72 = arith.index_cast %71 : i32 to index
      %c0_28 = arith.constant 0 : index
      %73 = vector.load %arg11[%72, %c0_28] : memref<64x512xf32, #tpu.memory_space<vmem>>, vector<8x512xf32>
      %74 = arith.truncf %66 : vector<8x128xf32> to vector<8x128xbf16>
      %cst_29 = arith.constant dense<0.000000e+00> : vector<8x512xf32>
      %75 = tpu.matmul %74, %21, %cst_29 {dimension_numbers = #tpu.dot_dimension_numbers<[1], [0], [0], [1], [0, 0, 1, 1], [], []>} : vector<8x128xbf16>, vector<128x512xbf16>, vector<8x512xf32> -> vector<8x512xf32>
      %76 = arith.addf %73, %75 : vector<8x512xf32>
      %77 = arith.truncf %76 : vector<8x512xf32> to vector<8x512xbf16>
      %78 = vector.extract_strided_slice %77 {offsets = [0, 0], sizes = [8, 128], strides = [1, 1]} : vector<8x512xbf16> to vector<8x128xbf16>
      %79 = arith.negf %78 : vector<8x128xbf16>
      %80 = math.exp %79 : vector<8x128xbf16>
      %cst_30 = arith.constant 1.000000e+00 : bf16
      %81 = vector.broadcast %cst_30 : bf16 to vector<8x128xbf16>
      %82 = arith.addf %81, %80 : vector<8x128xbf16>
      %83 = arith.divf %81, %82 : vector<8x128xbf16>
      %84 = arith.extf %83 : vector<8x128xbf16> to vector<8x128xf32>
      %85 = vector.extract_strided_slice %77 {offsets = [0, 128], sizes = [8, 128], strides = [1, 1]} : vector<8x512xbf16> to vector<8x128xbf16>
      %86 = arith.negf %85 : vector<8x128xbf16>
      %87 = math.exp %86 : vector<8x128xbf16>
      %cst_31 = arith.constant 1.000000e+00 : bf16
      %88 = vector.broadcast %cst_31 : bf16 to vector<8x128xbf16>
      %89 = arith.addf %88, %87 : vector<8x128xbf16>
      %90 = arith.divf %88, %89 : vector<8x128xbf16>
      %91 = arith.extf %90 : vector<8x128xbf16> to vector<8x128xf32>
      %92 = vector.extract_strided_slice %77 {offsets = [0, 256], sizes = [8, 128], strides = [1, 1]} : vector<8x512xbf16> to vector<8x128xbf16>
      %93 = math.tanh %92 : vector<8x128xbf16>
      %94 = arith.extf %93 : vector<8x128xbf16> to vector<8x128xf32>
      %95 = vector.extract_strided_slice %77 {offsets = [0, 384], sizes = [8, 128], strides = [1, 1]} : vector<8x512xbf16> to vector<8x128xbf16>
      %96 = arith.negf %95 : vector<8x128xbf16>
      %97 = math.exp %96 : vector<8x128xbf16>
      %cst_32 = arith.constant 1.000000e+00 : bf16
      %98 = vector.broadcast %cst_32 : bf16 to vector<8x128xbf16>
      %99 = arith.addf %98, %97 : vector<8x128xbf16>
      %100 = arith.divf %98, %99 : vector<8x128xbf16>
      %101 = arith.extf %100 : vector<8x128xbf16> to vector<8x128xf32>
      %102 = arith.mulf %91, %69 : vector<8x128xf32>
      %103 = arith.mulf %84, %94 : vector<8x128xf32>
      %104 = arith.addf %102, %103 : vector<8x128xf32>
      %105 = math.tanh %104 : vector<8x128xf32>
      %106 = arith.mulf %101, %105 : vector<8x128xf32>
      %107 = arith.addi %3, %c1_i32 : i32
      %108 = vector.broadcast %107 : i32 to vector<8x1xi32>
      %109 = arith.cmpi slt, %108, %20 : vector<8x1xi32>
      %110 = vector.shape_cast %109 : vector<8x1xi1> to vector<8x1xi1>
      %111 = vector.broadcast %110 : vector<8x1xi1> to vector<8x128xi1>
      %112 = arith.select %111, %106, %66 : vector<8x128xi1>, vector<8x128xf32>
      %113 = vector.shape_cast %109 : vector<8x1xi1> to vector<8x1xi1>
      %114 = vector.broadcast %113 : vector<8x1xi1> to vector<8x128xi1>
      %115 = arith.select %114, %104, %69 : vector<8x128xi1>, vector<8x128xf32>
      %c2_i32 = arith.constant 2 : i32
      %c8_i32_33 = arith.constant 8 : i32
      %116 = arith.muli %c2_i32, %c8_i32_33 : i32
      %117 = tpu.assume_multiple %116, 8 : i32
      %118 = arith.index_cast %117 : i32 to index
      %c0_34 = arith.constant 0 : index
      %119 = vector.load %arg11[%118, %c0_34] : memref<64x512xf32, #tpu.memory_space<vmem>>, vector<8x512xf32>
      %120 = arith.truncf %112 : vector<8x128xf32> to vector<8x128xbf16>
      %cst_35 = arith.constant dense<0.000000e+00> : vector<8x512xf32>
      %121 = tpu.matmul %120, %21, %cst_35 {dimension_numbers = #tpu.dot_dimension_numbers<[1], [0], [0], [1], [0, 0, 1, 1], [], []>} : vector<8x128xbf16>, vector<128x512xbf16>, vector<8x512xf32> -> vector<8x512xf32>
      %122 = arith.addf %119, %121 : vector<8x512xf32>
      %123 = arith.truncf %122 : vector<8x512xf32> to vector<8x512xbf16>
      %124 = vector.extract_strided_slice %123 {offsets = [0, 0], sizes = [8, 128], strides = [1, 1]} : vector<8x512xbf16> to vector<8x128xbf16>
      %125 = arith.negf %124 : vector<8x128xbf16>
      %126 = math.exp %125 : vector<8x128xbf16>
      %cst_36 = arith.constant 1.000000e+00 : bf16
      %127 = vector.broadcast %cst_36 : bf16 to vector<8x128xbf16>
      %128 = arith.addf %127, %126 : vector<8x128xbf16>
      %129 = arith.divf %127, %128 : vector<8x128xbf16>
      %130 = arith.extf %129 : vector<8x128xbf16> to vector<8x128xf32>
      %131 = vector.extract_strided_slice %123 {offsets = [0, 128], sizes = [8, 128], strides = [1, 1]} : vector<8x512xbf16> to vector<8x128xbf16>
      %132 = arith.negf %131 : vector<8x128xbf16>
      %133 = math.exp %132 : vector<8x128xbf16>
      %cst_37 = arith.constant 1.000000e+00 : bf16
      %134 = vector.broadcast %cst_37 : bf16 to vector<8x128xbf16>
      %135 = arith.addf %134, %133 : vector<8x128xbf16>
      %136 = arith.divf %134, %135 : vector<8x128xbf16>
      %137 = arith.extf %136 : vector<8x128xbf16> to vector<8x128xf32>
      %138 = vector.extract_strided_slice %123 {offsets = [0, 256], sizes = [8, 128], strides = [1, 1]} : vector<8x512xbf16> to vector<8x128xbf16>
      %139 = math.tanh %138 : vector<8x128xbf16>
      %140 = arith.extf %139 : vector<8x128xbf16> to vector<8x128xf32>
      %141 = vector.extract_strided_slice %123 {offsets = [0, 384], sizes = [8, 128], strides = [1, 1]} : vector<8x512xbf16> to vector<8x128xbf16>
      %142 = arith.negf %141 : vector<8x128xbf16>
      %143 = math.exp %142 : vector<8x128xbf16>
      %cst_38 = arith.constant 1.000000e+00 : bf16
      %144 = vector.broadcast %cst_38 : bf16 to vector<8x128xbf16>
      %145 = arith.addf %144, %143 : vector<8x128xbf16>
      %146 = arith.divf %144, %145 : vector<8x128xbf16>
      %147 = arith.extf %146 : vector<8x128xbf16> to vector<8x128xf32>
      %148 = arith.mulf %137, %115 : vector<8x128xf32>
      %149 = arith.mulf %130, %140 : vector<8x128xf32>
      %150 = arith.addf %148, %149 : vector<8x128xf32>
      %151 = math.tanh %150 : vector<8x128xf32>
      %152 = arith.mulf %147, %151 : vector<8x128xf32>
      %153 = arith.addi %3, %c2_i32 : i32
      %154 = vector.broadcast %153 : i32 to vector<8x1xi32>
      %155 = arith.cmpi slt, %154, %20 : vector<8x1xi32>
      %156 = vector.shape_cast %155 : vector<8x1xi1> to vector<8x1xi1>
      %157 = vector.broadcast %156 : vector<8x1xi1> to vector<8x128xi1>
      %158 = arith.select %157, %152, %112 : vector<8x128xi1>, vector<8x128xf32>
      %159 = vector.shape_cast %155 : vector<8x1xi1> to vector<8x1xi1>
      %160 = vector.broadcast %159 : vector<8x1xi1> to vector<8x128xi1>
      %161 = arith.select %160, %150, %115 : vector<8x128xi1>, vector<8x128xf32>
      %c3_i32 = arith.constant 3 : i32
      %c8_i32_39 = arith.constant 8 : i32
      %162 = arith.muli %c3_i32, %c8_i32_39 : i32
      %163 = tpu.assume_multiple %162, 8 : i32
      %164 = arith.index_cast %163 : i32 to index
      %c0_40 = arith.constant 0 : index
      %165 = vector.load %arg11[%164, %c0_40] : memref<64x512xf32, #tpu.memory_space<vmem>>, vector<8x512xf32>
      %166 = arith.truncf %158 : vector<8x128xf32> to vector<8x128xbf16>
      %cst_41 = arith.constant dense<0.000000e+00> : vector<8x512xf32>
      %167 = tpu.matmul %166, %21, %cst_41 {dimension_numbers = #tpu.dot_dimension_numbers<[1], [0], [0], [1], [0, 0, 1, 1], [], []>} : vector<8x128xbf16>, vector<128x512xbf16>, vector<8x512xf32> -> vector<8x512xf32>
      %168 = arith.addf %165, %167 : vector<8x512xf32>
      %169 = arith.truncf %168 : vector<8x512xf32> to vector<8x512xbf16>
      %170 = vector.extract_strided_slice %169 {offsets = [0, 0], sizes = [8, 128], strides = [1, 1]} : vector<8x512xbf16> to vector<8x128xbf16>
      %171 = arith.negf %170 : vector<8x128xbf16>
      %172 = math.exp %171 : vector<8x128xbf16>
      %cst_42 = arith.constant 1.000000e+00 : bf16
      %173 = vector.broadcast %cst_42 : bf16 to vector<8x128xbf16>
      %174 = arith.addf %173, %172 : vector<8x128xbf16>
      %175 = arith.divf %173, %174 : vector<8x128xbf16>
      %176 = arith.extf %175 : vector<8x128xbf16> to vector<8x128xf32>
      %177 = vector.extract_strided_slice %169 {offsets = [0, 128], sizes = [8, 128], strides = [1, 1]} : vector<8x512xbf16> to vector<8x128xbf16>
      %178 = arith.negf %177 : vector<8x128xbf16>
      %179 = math.exp %178 : vector<8x128xbf16>
      %cst_43 = arith.constant 1.000000e+00 : bf16
      %180 = vector.broadcast %cst_43 : bf16 to vector<8x128xbf16>
      %181 = arith.addf %180, %179 : vector<8x128xbf16>
      %182 = arith.divf %180, %181 : vector<8x128xbf16>
      %183 = arith.extf %182 : vector<8x128xbf16> to vector<8x128xf32>
      %184 = vector.extract_strided_slice %169 {offsets = [0, 256], sizes = [8, 128], strides = [1, 1]} : vector<8x512xbf16> to vector<8x128xbf16>
      %185 = math.tanh %184 : vector<8x128xbf16>
      %186 = arith.extf %185 : vector<8x128xbf16> to vector<8x128xf32>
      %187 = vector.extract_strided_slice %169 {offsets = [0, 384], sizes = [8, 128], strides = [1, 1]} : vector<8x512xbf16> to vector<8x128xbf16>
      %188 = arith.negf %187 : vector<8x128xbf16>
      %189 = math.exp %188 : vector<8x128xbf16>
      %cst_44 = arith.constant 1.000000e+00 : bf16
      %190 = vector.broadcast %cst_44 : bf16 to vector<8x128xbf16>
      %191 = arith.addf %190, %189 : vector<8x128xbf16>
      %192 = arith.divf %190, %191 : vector<8x128xbf16>
      %193 = arith.extf %192 : vector<8x128xbf16> to vector<8x128xf32>
      %194 = arith.mulf %183, %161 : vector<8x128xf32>
      %195 = arith.mulf %176, %186 : vector<8x128xf32>
      %196 = arith.addf %194, %195 : vector<8x128xf32>
      %197 = math.tanh %196 : vector<8x128xf32>
      %198 = arith.mulf %193, %197 : vector<8x128xf32>
      %199 = arith.addi %3, %c3_i32 : i32
      %200 = vector.broadcast %199 : i32 to vector<8x1xi32>
      %201 = arith.cmpi slt, %200, %20 : vector<8x1xi32>
      %202 = vector.shape_cast %201 : vector<8x1xi1> to vector<8x1xi1>
      %203 = vector.broadcast %202 : vector<8x1xi1> to vector<8x128xi1>
      %204 = arith.select %203, %198, %158 : vector<8x128xi1>, vector<8x128xf32>
      %205 = vector.shape_cast %201 : vector<8x1xi1> to vector<8x1xi1>
      %206 = vector.broadcast %205 : vector<8x1xi1> to vector<8x128xi1>
      %207 = arith.select %206, %196, %161 : vector<8x128xi1>, vector<8x128xf32>
      %c4_i32 = arith.constant 4 : i32
      %c8_i32_45 = arith.constant 8 : i32
      %208 = arith.muli %c4_i32, %c8_i32_45 : i32
      %209 = tpu.assume_multiple %208, 8 : i32
      %210 = arith.index_cast %209 : i32 to index
      %c0_46 = arith.constant 0 : index
      %211 = vector.load %arg11[%210, %c0_46] : memref<64x512xf32, #tpu.memory_space<vmem>>, vector<8x512xf32>
      %212 = arith.truncf %204 : vector<8x128xf32> to vector<8x128xbf16>
      %cst_47 = arith.constant dense<0.000000e+00> : vector<8x512xf32>
      %213 = tpu.matmul %212, %21, %cst_47 {dimension_numbers = #tpu.dot_dimension_numbers<[1], [0], [0], [1], [0, 0, 1, 1], [], []>} : vector<8x128xbf16>, vector<128x512xbf16>, vector<8x512xf32> -> vector<8x512xf32>
      %214 = arith.addf %211, %213 : vector<8x512xf32>
      %215 = arith.truncf %214 : vector<8x512xf32> to vector<8x512xbf16>
      %216 = vector.extract_strided_slice %215 {offsets = [0, 0], sizes = [8, 128], strides = [1, 1]} : vector<8x512xbf16> to vector<8x128xbf16>
      %217 = arith.negf %216 : vector<8x128xbf16>
      %218 = math.exp %217 : vector<8x128xbf16>
      %cst_48 = arith.constant 1.000000e+00 : bf16
      %219 = vector.broadcast %cst_48 : bf16 to vector<8x128xbf16>
      %220 = arith.addf %219, %218 : vector<8x128xbf16>
      %221 = arith.divf %219, %220 : vector<8x128xbf16>
      %222 = arith.extf %221 : vector<8x128xbf16> to vector<8x128xf32>
      %223 = vector.extract_strided_slice %215 {offsets = [0, 128], sizes = [8, 128], strides = [1, 1]} : vector<8x512xbf16> to vector<8x128xbf16>
      %224 = arith.negf %223 : vector<8x128xbf16>
      %225 = math.exp %224 : vector<8x128xbf16>
      %cst_49 = arith.constant 1.000000e+00 : bf16
      %226 = vector.broadcast %cst_49 : bf16 to vector<8x128xbf16>
      %227 = arith.addf %226, %225 : vector<8x128xbf16>
      %228 = arith.divf %226, %227 : vector<8x128xbf16>
      %229 = arith.extf %228 : vector<8x128xbf16> to vector<8x128xf32>
      %230 = vector.extract_strided_slice %215 {offsets = [0, 256], sizes = [8, 128], strides = [1, 1]} : vector<8x512xbf16> to vector<8x128xbf16>
      %231 = math.tanh %230 : vector<8x128xbf16>
      %232 = arith.extf %231 : vector<8x128xbf16> to vector<8x128xf32>
      %233 = vector.extract_strided_slice %215 {offsets = [0, 384], sizes = [8, 128], strides = [1, 1]} : vector<8x512xbf16> to vector<8x128xbf16>
      %234 = arith.negf %233 : vector<8x128xbf16>
      %235 = math.exp %234 : vector<8x128xbf16>
      %cst_50 = arith.constant 1.000000e+00 : bf16
      %236 = vector.broadcast %cst_50 : bf16 to vector<8x128xbf16>
      %237 = arith.addf %236, %235 : vector<8x128xbf16>
      %238 = arith.divf %236, %237 : vector<8x128xbf16>
      %239 = arith.extf %238 : vector<8x128xbf16> to vector<8x128xf32>
      %240 = arith.mulf %229, %207 : vector<8x128xf32>
      %241 = arith.mulf %222, %232 : vector<8x128xf32>
      %242 = arith.addf %240, %241 : vector<8x128xf32>
      %243 = math.tanh %242 : vector<8x128xf32>
      %244 = arith.mulf %239, %243 : vector<8x128xf32>
      %245 = arith.addi %3, %c4_i32 : i32
      %246 = vector.broadcast %245 : i32 to vector<8x1xi32>
      %247 = arith.cmpi slt, %246, %20 : vector<8x1xi32>
      %248 = vector.shape_cast %247 : vector<8x1xi1> to vector<8x1xi1>
      %249 = vector.broadcast %248 : vector<8x1xi1> to vector<8x128xi1>
      %250 = arith.select %249, %244, %204 : vector<8x128xi1>, vector<8x128xf32>
      %251 = vector.shape_cast %247 : vector<8x1xi1> to vector<8x1xi1>
      %252 = vector.broadcast %251 : vector<8x1xi1> to vector<8x128xi1>
      %253 = arith.select %252, %242, %207 : vector<8x128xi1>, vector<8x128xf32>
      %c5_i32 = arith.constant 5 : i32
      %c8_i32_51 = arith.constant 8 : i32
      %254 = arith.muli %c5_i32, %c8_i32_51 : i32
      %255 = tpu.assume_multiple %254, 8 : i32
      %256 = arith.index_cast %255 : i32 to index
      %c0_52 = arith.constant 0 : index
      %257 = vector.load %arg11[%256, %c0_52] : memref<64x512xf32, #tpu.memory_space<vmem>>, vector<8x512xf32>
      %258 = arith.truncf %250 : vector<8x128xf32> to vector<8x128xbf16>
      %cst_53 = arith.constant dense<0.000000e+00> : vector<8x512xf32>
      %259 = tpu.matmul %258, %21, %cst_53 {dimension_numbers = #tpu.dot_dimension_numbers<[1], [0], [0], [1], [0, 0, 1, 1], [], []>} : vector<8x128xbf16>, vector<128x512xbf16>, vector<8x512xf32> -> vector<8x512xf32>
      %260 = arith.addf %257, %259 : vector<8x512xf32>
      %261 = arith.truncf %260 : vector<8x512xf32> to vector<8x512xbf16>
      %262 = vector.extract_strided_slice %261 {offsets = [0, 0], sizes = [8, 128], strides = [1, 1]} : vector<8x512xbf16> to vector<8x128xbf16>
      %263 = arith.negf %262 : vector<8x128xbf16>
      %264 = math.exp %263 : vector<8x128xbf16>
      %cst_54 = arith.constant 1.000000e+00 : bf16
      %265 = vector.broadcast %cst_54 : bf16 to vector<8x128xbf16>
      %266 = arith.addf %265, %264 : vector<8x128xbf16>
      %267 = arith.divf %265, %266 : vector<8x128xbf16>
      %268 = arith.extf %267 : vector<8x128xbf16> to vector<8x128xf32>
      %269 = vector.extract_strided_slice %261 {offsets = [0, 128], sizes = [8, 128], strides = [1, 1]} : vector<8x512xbf16> to vector<8x128xbf16>
      %270 = arith.negf %269 : vector<8x128xbf16>
      %271 = math.exp %270 : vector<8x128xbf16>
      %cst_55 = arith.constant 1.000000e+00 : bf16
      %272 = vector.broadcast %cst_55 : bf16 to vector<8x128xbf16>
      %273 = arith.addf %272, %271 : vector<8x128xbf16>
      %274 = arith.divf %272, %273 : vector<8x128xbf16>
      %275 = arith.extf %274 : vector<8x128xbf16> to vector<8x128xf32>
      %276 = vector.extract_strided_slice %261 {offsets = [0, 256], sizes = [8, 128], strides = [1, 1]} : vector<8x512xbf16> to vector<8x128xbf16>
      %277 = math.tanh %276 : vector<8x128xbf16>
      %278 = arith.extf %277 : vector<8x128xbf16> to vector<8x128xf32>
      %279 = vector.extract_strided_slice %261 {offsets = [0, 384], sizes = [8, 128], strides = [1, 1]} : vector<8x512xbf16> to vector<8x128xbf16>
      %280 = arith.negf %279 : vector<8x128xbf16>
      %281 = math.exp %280 : vector<8x128xbf16>
      %cst_56 = arith.constant 1.000000e+00 : bf16
      %282 = vector.broadcast %cst_56 : bf16 to vector<8x128xbf16>
      %283 = arith.addf %282, %281 : vector<8x128xbf16>
      %284 = arith.divf %282, %283 : vector<8x128xbf16>
      %285 = arith.extf %284 : vector<8x128xbf16> to vector<8x128xf32>
      %286 = arith.mulf %275, %253 : vector<8x128xf32>
      %287 = arith.mulf %268, %278 : vector<8x128xf32>
      %288 = arith.addf %286, %287 : vector<8x128xf32>
      %289 = math.tanh %288 : vector<8x128xf32>
      %290 = arith.mulf %285, %289 : vector<8x128xf32>
      %291 = arith.addi %3, %c5_i32 : i32
      %292 = vector.broadcast %291 : i32 to vector<8x1xi32>
      %293 = arith.cmpi slt, %292, %20 : vector<8x1xi32>
      %294 = vector.shape_cast %293 : vector<8x1xi1> to vector<8x1xi1>
      %295 = vector.broadcast %294 : vector<8x1xi1> to vector<8x128xi1>
      %296 = arith.select %295, %290, %250 : vector<8x128xi1>, vector<8x128xf32>
      %297 = vector.shape_cast %293 : vector<8x1xi1> to vector<8x1xi1>
      %298 = vector.broadcast %297 : vector<8x1xi1> to vector<8x128xi1>
      %299 = arith.select %298, %288, %253 : vector<8x128xi1>, vector<8x128xf32>
      %c6_i32 = arith.constant 6 : i32
      %c8_i32_57 = arith.constant 8 : i32
      %300 = arith.muli %c6_i32, %c8_i32_57 : i32
      %301 = tpu.assume_multiple %300, 8 : i32
      %302 = arith.index_cast %301 : i32 to index
      %c0_58 = arith.constant 0 : index
      %303 = vector.load %arg11[%302, %c0_58] : memref<64x512xf32, #tpu.memory_space<vmem>>, vector<8x512xf32>
      %304 = arith.truncf %296 : vector<8x128xf32> to vector<8x128xbf16>
      %cst_59 = arith.constant dense<0.000000e+00> : vector<8x512xf32>
      %305 = tpu.matmul %304, %21, %cst_59 {dimension_numbers = #tpu.dot_dimension_numbers<[1], [0], [0], [1], [0, 0, 1, 1], [], []>} : vector<8x128xbf16>, vector<128x512xbf16>, vector<8x512xf32> -> vector<8x512xf32>
      %306 = arith.addf %303, %305 : vector<8x512xf32>
      %307 = arith.truncf %306 : vector<8x512xf32> to vector<8x512xbf16>
      %308 = vector.extract_strided_slice %307 {offsets = [0, 0], sizes = [8, 128], strides = [1, 1]} : vector<8x512xbf16> to vector<8x128xbf16>
      %309 = arith.negf %308 : vector<8x128xbf16>
      %310 = math.exp %309 : vector<8x128xbf16>
      %cst_60 = arith.constant 1.000000e+00 : bf16
      %311 = vector.broadcast %cst_60 : bf16 to vector<8x128xbf16>
      %312 = arith.addf %311, %310 : vector<8x128xbf16>
      %313 = arith.divf %311, %312 : vector<8x128xbf16>
      %314 = arith.extf %313 : vector<8x128xbf16> to vector<8x128xf32>
      %315 = vector.extract_strided_slice %307 {offsets = [0, 128], sizes = [8, 128], strides = [1, 1]} : vector<8x512xbf16> to vector<8x128xbf16>
      %316 = arith.negf %315 : vector<8x128xbf16>
      %317 = math.exp %316 : vector<8x128xbf16>
      %cst_61 = arith.constant 1.000000e+00 : bf16
      %318 = vector.broadcast %cst_61 : bf16 to vector<8x128xbf16>
      %319 = arith.addf %318, %317 : vector<8x128xbf16>
      %320 = arith.divf %318, %319 : vector<8x128xbf16>
      %321 = arith.extf %320 : vector<8x128xbf16> to vector<8x128xf32>
      %322 = vector.extract_strided_slice %307 {offsets = [0, 256], sizes = [8, 128], strides = [1, 1]} : vector<8x512xbf16> to vector<8x128xbf16>
      %323 = math.tanh %322 : vector<8x128xbf16>
      %324 = arith.extf %323 : vector<8x128xbf16> to vector<8x128xf32>
      %325 = vector.extract_strided_slice %307 {offsets = [0, 384], sizes = [8, 128], strides = [1, 1]} : vector<8x512xbf16> to vector<8x128xbf16>
      %326 = arith.negf %325 : vector<8x128xbf16>
      %327 = math.exp %326 : vector<8x128xbf16>
      %cst_62 = arith.constant 1.000000e+00 : bf16
      %328 = vector.broadcast %cst_62 : bf16 to vector<8x128xbf16>
      %329 = arith.addf %328, %327 : vector<8x128xbf16>
      %330 = arith.divf %328, %329 : vector<8x128xbf16>
      %331 = arith.extf %330 : vector<8x128xbf16> to vector<8x128xf32>
      %332 = arith.mulf %321, %299 : vector<8x128xf32>
      %333 = arith.mulf %314, %324 : vector<8x128xf32>
      %334 = arith.addf %332, %333 : vector<8x128xf32>
      %335 = math.tanh %334 : vector<8x128xf32>
      %336 = arith.mulf %331, %335 : vector<8x128xf32>
      %337 = arith.addi %3, %c6_i32 : i32
      %338 = vector.broadcast %337 : i32 to vector<8x1xi32>
      %339 = arith.cmpi slt, %338, %20 : vector<8x1xi32>
      %340 = vector.shape_cast %339 : vector<8x1xi1> to vector<8x1xi1>
      %341 = vector.broadcast %340 : vector<8x1xi1> to vector<8x128xi1>
      %342 = arith.select %341, %336, %296 : vector<8x128xi1>, vector<8x128xf32>
      %343 = vector.shape_cast %339 : vector<8x1xi1> to vector<8x1xi1>
      %344 = vector.broadcast %343 : vector<8x1xi1> to vector<8x128xi1>
      %345 = arith.select %344, %334, %299 : vector<8x128xi1>, vector<8x128xf32>
      %c7_i32 = arith.constant 7 : i32
      %c8_i32_63 = arith.constant 8 : i32
      %346 = arith.muli %c7_i32, %c8_i32_63 : i32
      %347 = tpu.assume_multiple %346, 8 : i32
      %348 = arith.index_cast %347 : i32 to index
      %c0_64 = arith.constant 0 : index
      %349 = vector.load %arg11[%348, %c0_64] : memref<64x512xf32, #tpu.memory_space<vmem>>, vector<8x512xf32>
      %350 = arith.truncf %342 : vector<8x128xf32> to vector<8x128xbf16>
      %cst_65 = arith.constant dense<0.000000e+00> : vector<8x512xf32>
      %351 = tpu.matmul %350, %21, %cst_65 {dimension_numbers = #tpu.dot_dimension_numbers<[1], [0], [0], [1], [0, 0, 1, 1], [], []>} : vector<8x128xbf16>, vector<128x512xbf16>, vector<8x512xf32> -> vector<8x512xf32>
      %352 = arith.addf %349, %351 : vector<8x512xf32>
      %353 = arith.truncf %352 : vector<8x512xf32> to vector<8x512xbf16>
      %354 = vector.extract_strided_slice %353 {offsets = [0, 0], sizes = [8, 128], strides = [1, 1]} : vector<8x512xbf16> to vector<8x128xbf16>
      %355 = arith.negf %354 : vector<8x128xbf16>
      %356 = math.exp %355 : vector<8x128xbf16>
      %cst_66 = arith.constant 1.000000e+00 : bf16
      %357 = vector.broadcast %cst_66 : bf16 to vector<8x128xbf16>
      %358 = arith.addf %357, %356 : vector<8x128xbf16>
      %359 = arith.divf %357, %358 : vector<8x128xbf16>
      %360 = arith.extf %359 : vector<8x128xbf16> to vector<8x128xf32>
      %361 = vector.extract_strided_slice %353 {offsets = [0, 128], sizes = [8, 128], strides = [1, 1]} : vector<8x512xbf16> to vector<8x128xbf16>
      %362 = arith.negf %361 : vector<8x128xbf16>
      %363 = math.exp %362 : vector<8x128xbf16>
      %cst_67 = arith.constant 1.000000e+00 : bf16
      %364 = vector.broadcast %cst_67 : bf16 to vector<8x128xbf16>
      %365 = arith.addf %364, %363 : vector<8x128xbf16>
      %366 = arith.divf %364, %365 : vector<8x128xbf16>
      %367 = arith.extf %366 : vector<8x128xbf16> to vector<8x128xf32>
      %368 = vector.extract_strided_slice %353 {offsets = [0, 256], sizes = [8, 128], strides = [1, 1]} : vector<8x512xbf16> to vector<8x128xbf16>
      %369 = math.tanh %368 : vector<8x128xbf16>
      %370 = arith.extf %369 : vector<8x128xbf16> to vector<8x128xf32>
      %371 = vector.extract_strided_slice %353 {offsets = [0, 384], sizes = [8, 128], strides = [1, 1]} : vector<8x512xbf16> to vector<8x128xbf16>
      %372 = arith.negf %371 : vector<8x128xbf16>
      %373 = math.exp %372 : vector<8x128xbf16>
      %cst_68 = arith.constant 1.000000e+00 : bf16
      %374 = vector.broadcast %cst_68 : bf16 to vector<8x128xbf16>
      %375 = arith.addf %374, %373 : vector<8x128xbf16>
      %376 = arith.divf %374, %375 : vector<8x128xbf16>
      %377 = arith.extf %376 : vector<8x128xbf16> to vector<8x128xf32>
      %378 = arith.mulf %367, %345 : vector<8x128xf32>
      %379 = arith.mulf %360, %370 : vector<8x128xf32>
      %380 = arith.addf %378, %379 : vector<8x128xf32>
      %381 = math.tanh %380 : vector<8x128xf32>
      %382 = arith.mulf %377, %381 : vector<8x128xf32>
      %383 = arith.addi %3, %c7_i32 : i32
      %384 = vector.broadcast %383 : i32 to vector<8x1xi32>
      %385 = arith.cmpi slt, %384, %20 : vector<8x1xi32>
      %386 = vector.shape_cast %385 : vector<8x1xi1> to vector<8x1xi1>
      %387 = vector.broadcast %386 : vector<8x1xi1> to vector<8x128xi1>
      %388 = arith.select %387, %382, %342 : vector<8x128xi1>, vector<8x128xf32>
      %389 = vector.shape_cast %385 : vector<8x1xi1> to vector<8x1xi1>
      %390 = vector.broadcast %389 : vector<8x1xi1> to vector<8x128xi1>
      %391 = arith.select %390, %380, %345 : vector<8x128xi1>, vector<8x128xf32>
      %c8_i32_69 = arith.constant 8 : i32
      %c0_70 = arith.constant 0 : index
      %c0_71 = arith.constant 0 : index
      %392 = vector.load %arg12[%c0_70, %c0_71] : memref<8x128xf32, #tpu.memory_space<vmem>>, vector<8x128xf32>
      tpu.vector_store %arg12[%c0_70, %c0_71], %388 {strides = array<i32>} : memref<8x128xf32, #tpu.memory_space<vmem>>, vector<8x128xf32>,
      %c0_72 = arith.constant 0 : index
      %c0_73 = arith.constant 0 : index
      %393 = vector.load %arg13[%c0_72, %c0_73] : memref<8x128xf32, #tpu.memory_space<vmem>>, vector<8x128xf32>
      tpu.vector_store %arg13[%c0_72, %c0_73], %391 {strides = array<i32>} : memref<8x128xf32, #tpu.memory_space<vmem>>, vector<8x128xf32>,
    } else {
    }
    %c0_i32_2 = arith.constant 0 : i32
    %9 = arith.cmpi eq, %arg1, %c0_i32_2 : i32
    %10 = arith.extui %9 : i1 to i32
    %c0_i32_3 = arith.constant 0 : i32
    %11 = arith.cmpi ne, %10, %c0_i32_3 : i32
    scf.if %11 {
      %c0 = arith.constant 0 : index
      %c0_4 = arith.constant 0 : index
      %12 = vector.load %arg12[%c0, %c0_4] : memref<8x128xf32, #tpu.memory_space<vmem>>, vector<8x128xf32>
      %13 = arith.truncf %12 : vector<8x128xf32> to vector<8x128xbf16>
      %c0_5 = arith.constant 0 : index
      %c0_6 = arith.constant 0 : index
      %14 = vector.load %arg8[%c0_5, %c0_6] : memref<128x128xbf16, #tpu.memory_space<vmem>>, vector<128x128xbf16>
      %cst = arith.constant dense<0.000000e+00> : vector<8x128xf32>
      %15 = tpu.matmul %13, %14, %cst {dimension_numbers = #tpu.dot_dimension_numbers<[1], [0], [0], [1], [0, 0, 1, 1], [], []>} : vector<8x128xbf16>, vector<128x128xbf16>, vector<8x128xf32> -> vector<8x128xf32>
      %c0_7 = arith.constant 0 : index
      %c0_8 = arith.constant 0 : index
      %16 = vector.load %arg9[%c0_7, %c0_8] : memref<1x128xf32, #tpu.memory_space<vmem>>, vector<1x128xf32>
      %17 = vector.broadcast %16 : vector<1x128xf32> to vector<8x128xf32>
      %18 = arith.addf %15, %17 : vector<8x128xf32>
      %c0_9 = arith.constant 0 : index
      %c0_10 = arith.constant 0 : index
      %19 = vector.load %arg10[%c0_9, %c0_10] : memref<8x128xf32, #tpu.memory_space<vmem>>, vector<8x128xf32>
      tpu.vector_store %arg10[%c0_9, %c0_10], %18 {strides = array<i32>} : memref<8x128xf32, #tpu.memory_space<vmem>>, vector<8x128xf32>,
    } else {
    }
    return
  }
  func.func @transform_0(%arg0: i32, %arg1: i32, %arg2: memref<1xi32, #tpu.memory_space<smem>>) -> (i32, i32, i32) {
    %c0_i32 = arith.constant 0 : i32
    %c0_i32_0 = arith.constant 0 : i32
    return %arg1, %arg0, %c0_i32 : i32, i32, i32
  }
  func.func @transform_1(%arg0: i32, %arg1: i32, %arg2: memref<1xi32, #tpu.memory_space<smem>>) -> (i32, i32) {
    %c0_i32 = arith.constant 0 : i32
    %c0_i32_0 = arith.constant 0 : i32
    return %arg0, %c0_i32 : i32, i32
  }
  func.func @transform_2(%arg0: i32, %arg1: i32, %arg2: memref<1xi32, #tpu.memory_space<smem>>) -> (i32, i32) {
    %c0_i32 = arith.constant 0 : i32
    %c0_i32_0 = arith.constant 0 : i32
    %c0_i32_1 = arith.constant 0 : i32
    return %c0_i32, %c0_i32_0 : i32, i32
  }
  func.func @transform_3(%arg0: i32, %arg1: i32, %arg2: memref<1xi32, #tpu.memory_space<smem>>) -> (i32, i32) {
    %c0_i32 = arith.constant 0 : i32
    %c0_i32_0 = arith.constant 0 : i32
    %c0_i32_1 = arith.constant 0 : i32
    return %c0_i32, %c0_i32_0 : i32, i32
  }
  func.func @transform_4(%arg0: i32, %arg1: i32, %arg2: memref<1xi32, #tpu.memory_space<smem>>) -> (i32, i32) {
    %c0_i32 = arith.constant 0 : i32
    %c0_i32_0 = arith.constant 0 : i32
    %c0_i32_1 = arith.constant 0 : i32
    return %c0_i32, %c0_i32_0 : i32, i32
  }
  func.func @transform_5(%arg0: i32, %arg1: i32, %arg2: memref<1xi32, #tpu.memory_space<smem>>) -> (i32, i32) {
    %c0_i32 = arith.constant 0 : i32
    %c0_i32_0 = arith.constant 0 : i32
    %c0_i32_1 = arith.constant 0 : i32
    return %c0_i32, %c0_i32_0 : i32, i32
  }
  func.func @transform_6(%arg0: i32, %arg1: i32, %arg2: memref<1xi32, #tpu.memory_space<smem>>) -> (i32, i32) {
    %c0_i32 = arith.constant 0 : i32
    %c0_i32_0 = arith.constant 0 : i32
    %c0_i32_1 = arith.constant 0 : i32
    return %c0_i32, %c0_i32_0 : i32, i32
  }
  func.func @transform_7(%arg0: i32, %arg1: i32, %arg2: memref<1xi32, #tpu.memory_space<smem>>) -> (i32, i32) {
    %c0_i32 = arith.constant 0 : i32
    %c0_i32_0 = arith.constant 0 : i32
    return %arg0, %c0_i32 : i32, i32
  }
}

</mosaic_0001>

<llo_original>
// kernel: tpu_custom_call.1
$region0: #{tpu_custom_call.1}
  #allocation0 [shape = 'u32[]', space=smem, size = 0x4, offset = 0x4, fixed_abs, tag = 'smem constant byte address 0x4 - core index']
  #allocation1 [shape = 'u32[144,128]{1,0:T(1,128)}', space=vmem, size = 0x12000, scoped, tag = 'internal scratch']
  #allocation2 [shape = 'f32[64,512]{1,0:T(8,128)}', space=vmem, size = 0x20000, scoped, tag = 'scratch operand']
  #allocation3 [shape = 'f32[8,128]{1,0:T(8,128)}', space=vmem, size = 0x1000, scoped, tag = 'scratch operand']
  #allocation4 [shape = 'f32[8,128]{1,0:T(8,128)}', space=vmem, size = 0x1000, scoped, tag = 'scratch operand']
  #allocation5 [shape = 's32[1]{0}', space=sflag, size = 0x4, scoped, tag = 'scoped memory for tpu_custom_call.1']
  #allocation6 [shape = 's32[1]{0:T(128)S(6)}', space=smem, size = 0x200, scoped, tag = 'prefetched SMEM operand 0']
  %s0 = inlined_call_operand.<no memory space> [shape: s32[1], index: 0, kind: input, shape index: {}]
  %s1 = inlined_call_operand.hbm [shape: bf16[8,8,32], index: 1, kind: input, shape index: {}]
  %s2 = inlined_call_operand.vmem [shape: s32[8,1], index: 2, kind: input, shape index: {}]
  %s3 = inlined_call_operand.hbm [shape: bf16[32,512], index: 3, kind: input, shape index: {}]
  %s4 = inlined_call_operand.vmem [shape: f32[1,512], index: 4, kind: input, shape index: {}]
  %s5 = inlined_call_operand.hbm [shape: bf16[128,512], index: 5, kind: input, shape index: {}]
  %s6 = inlined_call_operand.hbm [shape: bf16[128,128], index: 6, kind: input, shape index: {}]
  %s7 = inlined_call_operand.vmem [shape: f32[1,128], index: 7, kind: input, shape index: {}]
  %s8 = inlined_call_operand.hbm [shape: f32[8,128], index: 8, kind: output, shape index: {}]
  %s9 = sld [smem:[#allocation0]]
  $region66: #{tpu_custom_call.1} parent=0
    _
  %s11 = ssub.s32 1, %s9
  %s12 = scalar_select 0, %s11, %s9
  %13 = sst [smem:[#allocation6]] %s0
  $region1: #{tpu_custom_call.1} parent=0
    #allocation7 [shape = 'u8[16384]{0}', space=vmem, size = 0x4000, scoped, tag = 'input window, operand 1, single buffered']
    #allocation8 [shape = 's32[1]{0}', space=sflag, size = 0x4, scoped, tag = 'scoped memory for tpu_custom_call.1']
    #allocation9 [shape = 's32[1]{0}', space=sflag, size = 0x4, scoped, tag = 'scoped memory for tpu_custom_call.1']
    #allocation10 [shape = 'u8[32768]{0}', space=vmem, size = 0x8000, scoped, tag = 'input window, operand 3, single buffered']
    #allocation11 [shape = 's32[1]{0}', space=sflag, size = 0x4, scoped, tag = 'scoped memory for tpu_custom_call.1']
    #allocation12 [shape = 'u8[131072]{0}', space=vmem, size = 0x20000, scoped, tag = 'input window, operand 5, single buffered']
    #allocation13 [shape = 'u8[32768]{0}', space=vmem, size = 0x8000, scoped, tag = 'input window, operand 6, single buffered']
    #allocation14 [shape = 's32[1]{0}', space=sflag, size = 0x4, scoped, tag = 'scoped memory for tpu_custom_call.1']
    #allocation15 [shape = 'u8[4096]{0}', space=vmem, size = 0x1000, scoped, tag = 'output window, operand 0, single buffered']
    %14 = vsyncpa [#allocation8], 0
    %15 = vsyncpa [#allocation11], 0
    %16 = vsyncpa [#allocation14], 0
    %17 = vsyncpa [#allocation9], 0
    // Predicated region
    $region2: #{tpu_custom_call.1} parent=1 // pred_check
      _
    $region3: #{tpu_custom_call.1} parent=1 // pred_check_branch
      %19 = sbr.rel (0) target = $region5
    $region4: #{tpu_custom_call.1} parent=1 // pred_region
      %s21 = ssub.s32 512, 512
      %22 = vsyncadd [#allocation8], %s21
      %s23 = sshll.u32 [#allocation7], 4
      %s24 = int_to_ptr.vmem [resolvable:$true] %s23
      %29 = dma.hbm_to_vmem [thread:$0]  %s1, 512, %s24, [#allocation8], 64, 64, 4
    $region5: #{tpu_custom_call.1} parent=1 // pred_fallthru
      _
    // Predicated region
    $region6: #{tpu_custom_call.1} parent=1 // pred_check
      _
    $region7: #{tpu_custom_call.1} parent=1 // pred_check_branch
      %31 = sbr.rel (0) target = $region9
    $region8: #{tpu_custom_call.1} parent=1 // pred_region
      _
    $region9: #{tpu_custom_call.1} parent=1 // pred_fallthru
      _
    // Predicated region
    $region10: #{tpu_custom_call.1} parent=1 // pred_check
      _
    $region11: #{tpu_custom_call.1} parent=1 // pred_check_branch
      %33 = sbr.rel (0) target = $region13
    $region12: #{tpu_custom_call.1} parent=1 // pred_region
      %s35 = ssub.s32 1024, 1024
      %36 = vsyncadd [#allocation11], %s35
      %s37 = sshll.u32 [#allocation10], 4
      %s38 = int_to_ptr.vmem [resolvable:$true] %s37
      %43 = dma.hbm_to_vmem [thread:$0]  %s3, 1024, %s38, [#allocation11], 256, 256, 16
    $region13: #{tpu_custom_call.1} parent=1 // pred_fallthru
      _
    // Predicated region
    $region14: #{tpu_custom_call.1} parent=1 // pred_check
      _
    $region15: #{tpu_custom_call.1} parent=1 // pred_check_branch
      %45 = sbr.rel (0) target = $region17
    $region16: #{tpu_custom_call.1} parent=1 // pred_region
      _
    $region17: #{tpu_custom_call.1} parent=1 // pred_fallthru
      _
    // Predicated region
    $region18: #{tpu_custom_call.1} parent=1 // pred_check
      _
    $region19: #{tpu_custom_call.1} parent=1 // pred_check_branch
      %47 = sbr.rel (0) target = $region21
    $region20: #{tpu_custom_call.1} parent=1 // pred_region
      %s49 = ssub.s32 4096, 4096
      %50 = vsyncadd [#allocation11], %s49
      %s51 = sshll.u32 [#allocation12], 4
      %s52 = int_to_ptr.vmem [resolvable:$true] %s51
      %57 = dma.hbm_to_vmem [thread:$0]  %s5, 4096, %s52, [#allocation11], 256, 256, 16
    $region21: #{tpu_custom_call.1} parent=1 // pred_fallthru
      _
    // Predicated region
    $region22: #{tpu_custom_call.1} parent=1 // pred_check
      _
    $region23: #{tpu_custom_call.1} parent=1 // pred_check_branch
      %59 = sbr.rel (0) target = $region25
    $region24: #{tpu_custom_call.1} parent=1 // pred_region
      %s61 = ssub.s32 1024, 1024
      %62 = vsyncadd [#allocation14], %s61
      %s63 = sshll.u32 [#allocation13], 4
      %s64 = int_to_ptr.vmem [resolvable:$true] %s63
      %69 = dma.hbm_to_vmem [thread:$0]  %s6, 1024, %s64, [#allocation14], 64, 64, 4
    $region25: #{tpu_custom_call.1} parent=1 // pred_fallthru
      _
    // Predicated region
    $region26: #{tpu_custom_call.1} parent=1 // pred_check
      _
    $region27: #{tpu_custom_call.1} parent=1 // pred_check_branch
      %71 = sbr.rel (0) target = $region29
    $region28: #{tpu_custom_call.1} parent=1 // pred_region
      _
    $region29: #{tpu_custom_call.1} parent=1 // pred_fallthru
      _
    // Predicated region
    $region30: #{tpu_custom_call.1} parent=1 // pred_check
      _
    $region31: #{tpu_custom_call.1} parent=1 // pred_check_branch
      %73 = sbr.rel (0) target = $region33
    $region32: #{tpu_custom_call.1} parent=1 // pred_region
      %74 = dma.done [#allocation8], 512
    $region33: #{tpu_custom_call.1} parent=1 // pred_fallthru
      _
    // Predicated region
    $region34: #{tpu_custom_call.1} parent=1 // pred_check
      _
    $region35: #{tpu_custom_call.1} parent=1 // pred_check_branch
      %76 = sbr.rel (0) target = $region37
    $region36: #{tpu_custom_call.1} parent=1 // pred_region
      %77 = dma.done [#allocation11], 1024
    $region37: #{tpu_custom_call.1} parent=1 // pred_fallthru
      _
    // Predicated region
    $region38: #{tpu_custom_call.1} parent=1 // pred_check
      _
    $region39: #{tpu_custom_call.1} parent=1 // pred_check_branch
      %79 = sbr.rel (0) target = $region41
    $region40: #{tpu_custom_call.1} parent=1 // pred_region
      %80 = dma.done [#allocation11], 4096
    $region41: #{tpu_custom_call.1} parent=1 // pred_fallthru
      _
    // Predicated region
    $region42: #{tpu_custom_call.1} parent=1 // pred_check
      _
    $region43: #{tpu_custom_call.1} parent=1 // pred_check_branch
      %82 = sbr.rel (0) target = $region45
    $region44: #{tpu_custom_call.1} parent=1 // pred_region
      %83 = dma.done [#allocation14], 1024
    $region45: #{tpu_custom_call.1} parent=1 // pred_fallthru
      _
    %p86 = scmp.eq.s32.totalorder 0, 0
    // Predicated region
    $region46: #{tpu_custom_call.1} parent=1 // pred_check
      %p87 = pneg %p86
    $region47: #{tpu_custom_call.1} parent=1 // pred_check_branch
      %89 = sbr.rel (%p87) target = $region49
    $region48: #{tpu_custom_call.1} parent=1 // pred_region
      %90 = vst [vmem:[#allocation3] sm:$0xff] 0.0
      %91 = vst [vmem:[#allocation4] sm:$0xff] 0.0
    $region49: #{tpu_custom_call.1} parent=1 // pred_fallthru
      _
    %s92 = smul.u32 0, 8
    %s93 = sld [smem:[#allocation6]]
    %p94 = scmp.lt.s32.totalorder %s92, %s93
    // Predicated region
    $region50: #{tpu_custom_call.1} parent=1 // pred_check
      %p95 = pneg %p94
    $region51: #{tpu_custom_call.1} parent=1 // pred_check_branch
      %97 = sbr.rel (%p95) target = $region53
    $region52: #{tpu_custom_call.1} parent=1 // pred_region
      %v98 = vld [vmem:[#allocation7] sm:$0xf]
      %v99 = vld [vmem:[#allocation7 + $0x4] sm:$0xf]
      %v100 = vld [vmem:[#allocation7 + $0x8] sm:$0xf]
      %v101 = vld [vmem:[#allocation7 + $0xc] sm:$0xf]
      %v102 = vld [vmem:[#allocation7 + $0x10] sm:$0xf]
      %v103 = vld [vmem:[#allocation7 + $0x14] sm:$0xf]
      %v104 = vld [vmem:[#allocation7 + $0x18] sm:$0xf]
      %v105 = vld [vmem:[#allocation7 + $0x1c] sm:$0xf]
      %v106 = vld [vmem:[#allocation10] sm:$0xff]
      %v107 = vld [vmem:[#allocation10 + $0x8] sm:$0xff]
      %v108 = vld [vmem:[#allocation10 + $0x10] sm:$0xff]
      %v109 = vld [vmem:[#allocation10 + $0x18] sm:$0xff]
      %v110 = vld [vmem:[#allocation10 + $0x20] sm:$0xff]
      %v111 = vld [vmem:[#allocation10 + $0x28] sm:$0xff]
      %v112 = vld [vmem:[#allocation10 + $0x30] sm:$0xff]
      %v113 = vld [vmem:[#allocation10 + $0x38] sm:$0xff]
      %v114 = vld [vmem:[%s4] sm:$0xf]
      %v116 = vlaneseq
      %v117 = vshrl.u32 %v116, 7
      %v118 = vsub.s32 0, %v117
      %v119 = vrot.slane %v114, %v118
      %v120 = vlaneseq
      %v121 = vshrl.u32 %v120, 7
      %v122 = vsub.s32 1, %v121
      %v123 = vrot.slane %v114, %v122
      %v124 = vlaneseq
      %v125 = vshrl.u32 %v124, 7
      %v126 = vsub.s32 2, %v125
      %v127 = vrot.slane %v114, %v126
      %v128 = vlaneseq
      %v129 = vshrl.u32 %v128, 7
      %v130 = vsub.s32 3, %v129
      %v131 = vrot.slane %v114, %v130
      %v144 = vunpack.c.l.b16 %v98
      %v145 = vunpack.c.l.b16 %v99
      %v146 = vunpack.c.l.b16 %v100
      %v147 = vunpack.c.l.b16 %v101
      %v148 = vunpack.c.l.b16 %v102
      %v149 = vunpack.c.l.b16 %v103
      %v150 = vunpack.c.l.b16 %v104
      %v151 = vunpack.c.l.b16 %v105
      %v152 = vpack.c.b16 %v145, %v144
      %v153 = vpack.c.b16 %v147, %v146
      %v154 = vpack.c.b16 %v149, %v148
      %v155 = vpack.c.b16 %v151, %v150
      %v164 = vunpack.c.l.b16 %v106
      %v165 = vunpack.c.h.b16 %v106
      %v166 = vunpack.c.l.b16 %v107
      %v167 = vunpack.c.h.b16 %v107
      %v168 = vunpack.c.l.b16 %v108
      %v169 = vunpack.c.h.b16 %v108
      %v170 = vunpack.c.l.b16 %v109
      %v171 = vunpack.c.h.b16 %v109
      %v172 = vunpack.c.l.b16 %v110
      %v173 = vunpack.c.h.b16 %v110
      %v174 = vunpack.c.l.b16 %v111
      %v175 = vunpack.c.h.b16 %v111
      %v176 = vunpack.c.l.b16 %v112
      %v177 = vunpack.c.h.b16 %v112
      %v178 = vunpack.c.l.b16 %v113
      %v179 = vunpack.c.h.b16 %v113
      %v180 = vpack.c.b16 %v168, %v164
      %v181 = vpack.c.b16 %v169, %v165
      %v182 = vpack.c.b16 %v170, %v166
      %v183 = vpack.c.b16 %v171, %v167
      %v184 = vpack.c.b16 %v176, %v172
      %v185 = vpack.c.b16 %v177, %v173
      %v186 = vpack.c.b16 %v178, %v174
      %v187 = vpack.c.b16 %v179, %v175
      %vm196 = vcmask 261120
      %v198 = vsel %vm196, %v152, 0
      %v201 = vsel %vm196, %v153, 0
      %v204 = vsel %vm196, %v154, 0
      %v207 = vsel %vm196, %v155, 0
      %209 = vmatprep.subr.bf16.mxu0 0
      %210 = vmatpush1.bf16.msra.mxu0 0
      %211 = vmatprep.subr.bf16.mxu0 0
      %212 = vmatpush1.bf16.msra.mxu0 0
      %213 = vmatprep.subr.bf16.mxu0 0
      %214 = vmatpush1.bf16.msra.mxu0 0
      %215 = vmatprep.subr.bf16.mxu0 0
      %216 = vmatpush1.bf16.msra.mxu0 0
      %217 = vmatprep.subr.bf16.mxu0 0
      %218 = vmatpush1.bf16.msra.mxu0 0
      %219 = vmatprep.subr.bf16.mxu0 0
      %220 = vmatpush1.bf16.msra.mxu0 0
      %221 = vmatprep.subr.bf16.mxu0 %v185
      %222 = vmatpush1.bf16.msra.mxu0 %v184
      %223 = vmatprep.subr.bf16.mxu0 %v181
      %224 = vmatpush1.bf16.msra.mxu0 %v180
      %225 = vmatprep.subr.bf16.mxu0 0
      %226 = vmatpush2.bf16.msra.mxu0 0
      %227 = vmatprep.subr.bf16.mxu0 0
      %228 = vmatpush2.bf16.msra.mxu0 0
      %229 = vmatprep.subr.bf16.mxu0 0
      %230 = vmatpush2.bf16.msra.mxu0 0
      %231 = vmatprep.subr.bf16.mxu0 0
      %232 = vmatpush2.bf16.msra.mxu0 0
      %233 = vmatprep.subr.bf16.mxu0 0
      %234 = vmatpush2.bf16.msra.mxu0 0
      %235 = vmatprep.subr.bf16.mxu0 0
      %236 = vmatpush2.bf16.msra.mxu0 0
      %237 = vmatprep.subr.bf16.mxu0 0
      %238 = vmatpush2.bf16.msra.mxu0 0
      %239 = vmatprep.subr.bf16.mxu0 0
      %240 = vmatpush2.bf16.msra.mxu0 0
      %241 = vmatprep.mubr.bf16.mxu0 0
      %242 = vmatmul.mubr.bf16.gmra.mxu0 %v198
      %v243 = vpop.f32.mrf.mxu0
      %v244 = vadd.f32 %v119, %v243
      %v245 = vpop.f32.mrf.mxu0
      %v246 = vadd.f32 %v123, %v245
      %v247 = vpop.f32.mrf.mxu0
      %v248 = vadd.f32 %v119, %v247
      %v249 = vpop.f32.mrf.mxu0
      %v250 = vadd.f32 %v123, %v249
      %251 = vmatprep.mubr.bf16.mxu0 0
      %252 = vmatmul.mubr.bf16.gmra.mxu0 %v201
      %v253 = vpop.f32.mrf.mxu0
      %v254 = vadd.f32 %v119, %v253
      %v255 = vpop.f32.mrf.mxu0
      %v256 = vadd.f32 %v123, %v255
      %v257 = vpop.f32.mrf.mxu0
      %v258 = vadd.f32 %v119, %v257
      %v259 = vpop.f32.mrf.mxu0
      %v260 = vadd.f32 %v123, %v259
      %261 = vmatprep.mubr.bf16.mxu0 0
      %262 = vmatmul.mubr.bf16.gmra.mxu0 %v204
      %v263 = vpop.f32.mrf.mxu0
      %v264 = vadd.f32 %v119, %v263
      %v265 = vpop.f32.mrf.mxu0
      %v266 = vadd.f32 %v123, %v265
      %v267 = vpop.f32.mrf.mxu0
      %v268 = vadd.f32 %v119, %v267
      %v269 = vpop.f32.mrf.mxu0
      %v270 = vadd.f32 %v123, %v269
      %271 = vmatprep.mubr.bf16.mxu0 0
      %272 = vmatmul.mubr.bf16.gmra.mxu0 %v207
      %v273 = vpop.f32.mrf.mxu0
      %v274 = vadd.f32 %v119, %v273
      %v275 = vpop.f32.mrf.mxu0
      %v276 = vadd.f32 %v123, %v275
      %v277 = vpop.f32.mrf.mxu0
      %v278 = vadd.f32 %v119, %v277
      %v279 = vpop.f32.mrf.mxu0
      %v280 = vadd.f32 %v123, %v279
      %281 = vdwg.mxu0
      %282 = vmatprep.subr.bf16.mxu0 0
      %283 = vmatpush1.bf16.msra.mxu0 0
      %284 = vmatprep.subr.bf16.mxu0 0
      %285 = vmatpush1.bf16.msra.mxu0 0
      %286 = vmatprep.subr.bf16.mxu0 0
      %287 = vmatpush1.bf16.msra.mxu0 0
      %288 = vmatprep.subr.bf16.mxu0 0
      %289 = vmatpush1.bf16.msra.mxu0 0
      %290 = vmatprep.subr.bf16.mxu0 0
      %291 = vmatpush1.bf16.msra.mxu0 0
      %292 = vmatprep.subr.bf16.mxu0 0
      %293 = vmatpush1.bf16.msra.mxu0 0
      %294 = vmatprep.subr.bf16.mxu0 %v187
      %295 = vmatpush1.bf16.msra.mxu0 %v186
      %296 = vmatprep.subr.bf16.mxu0 %v183
      %297 = vmatpush1.bf16.msra.mxu0 %v182
      %298 = vmatprep.subr.bf16.mxu0 0
      %299 = vmatpush2.bf16.msra.mxu0 0
      %300 = vmatprep.subr.bf16.mxu0 0
      %301 = vmatpush2.bf16.msra.mxu0 0
      %302 = vmatprep.subr.bf16.mxu0 0
      %303 = vmatpush2.bf16.msra.mxu0 0
      %304 = vmatprep.subr.bf16.mxu0 0
      %305 = vmatpush2.bf16.msra.mxu0 0
      %306 = vmatprep.subr.bf16.mxu0 0
      %307 = vmatpush2.bf16.msra.mxu0 0
      %308 = vmatprep.subr.bf16.mxu0 0
      %309 = vmatpush2.bf16.msra.mxu0 0
      %310 = vmatprep.subr.bf16.mxu0 0
      %311 = vmatpush2.bf16.msra.mxu0 0
      %312 = vmatprep.subr.bf16.mxu0 0
      %313 = vmatpush2.bf16.msra.mxu0 0
      %314 = vmatprep.mubr.bf16.mxu0 0
      %315 = vmatmul.mubr.bf16.gmra.mxu0 %v198
      %v316 = vpop.f32.mrf.mxu0
      %v317 = vadd.f32 %v127, %v316
      %v318 = vpop.f32.mrf.mxu0
      %v319 = vadd.f32 %v131, %v318
      %v320 = vpop.f32.mrf.mxu0
      %v321 = vadd.f32 %v127, %v320
      %v322 = vpop.f32.mrf.mxu0
      %v323 = vadd.f32 %v131, %v322
      %324 = vmatprep.mubr.bf16.mxu0 0
      %325 = vmatmul.mubr.bf16.gmra.mxu0 %v201
      %v326 = vpop.f32.mrf.mxu0
      %v327 = vadd.f32 %v127, %v326
      %v328 = vpop.f32.mrf.mxu0
      %v329 = vadd.f32 %v131, %v328
      %v330 = vpop.f32.mrf.mxu0
      %v331 = vadd.f32 %v127, %v330
      %v332 = vpop.f32.mrf.mxu0
      %v333 = vadd.f32 %v131, %v332
      %334 = vmatprep.mubr.bf16.mxu0 0
      %335 = vmatmul.mubr.bf16.gmra.mxu0 %v204
      %v336 = vpop.f32.mrf.mxu0
      %v337 = vadd.f32 %v127, %v336
      %v338 = vpop.f32.mrf.mxu0
      %v339 = vadd.f32 %v131, %v338
      %v340 = vpop.f32.mrf.mxu0
      %v341 = vadd.f32 %v127, %v340
      %v342 = vpop.f32.mrf.mxu0
      %v343 = vadd.f32 %v131, %v342
      %344 = vmatprep.mubr.bf16.mxu0 0
      %345 = vmatmul.mubr.bf16.gmra.mxu0 %v207
      %v346 = vpop.f32.mrf.mxu0
      %v347 = vadd.f32 %v127, %v346
      %v348 = vpop.f32.mrf.mxu0
      %v349 = vadd.f32 %v131, %v348
      %v350 = vpop.f32.mrf.mxu0
      %v351 = vadd.f32 %v127, %v350
      %v352 = vpop.f32.mrf.mxu0
      %v353 = vadd.f32 %v131, %v352
      %354 = vdwg.mxu0
      %355 = vst [vmem:[#allocation2] sm:$0xff] %v244
      %356 = vst [vmem:[#allocation2 + $0x8] sm:$0xff] %v246
      %357 = vst [vmem:[#allocation2 + $0x10] sm:$0xff] %v317
      %358 = vst [vmem:[#allocation2 + $0x18] sm:$0xff] %v319
      %359 = vst [vmem:[#allocation2 + $0x20] sm:$0xff] %v248
      %360 = vst [vmem:[#allocation2 + $0x28] sm:$0xff] %v250
      %361 = vst [vmem:[#allocation2 + $0x30] sm:$0xff] %v321
      %362 = vst [vmem:[#allocation2 + $0x38] sm:$0xff] %v323
      %363 = vst [vmem:[#allocation2 + $0x40] sm:$0xff] %v254
      %364 = vst [vmem:[#allocation2 + $0x48] sm:$0xff] %v256
      %365 = vst [vmem:[#allocation2 + $0x50] sm:$0xff] %v327
      %366 = vst [vmem:[#allocation2 + $0x58] sm:$0xff] %v329
      %367 = vst [vmem:[#allocation2 + $0x60] sm:$0xff] %v258
      %368 = vst [vmem:[#allocation2 + $0x68] sm:$0xff] %v260
      %369 = vst [vmem:[#allocation2 + $0x70] sm:$0xff] %v331
      %370 = vst [vmem:[#allocation2 + $0x78] sm:$0xff] %v333
      %371 = vst [vmem:[#allocation2 + $0x80] sm:$0xff] %v264
      %372 = vst [vmem:[#allocation2 + $0x88] sm:$0xff] %v266
      %373 = vst [vmem:[#allocation2 + $0x90] sm:$0xff] %v337
      %374 = vst [vmem:[#allocation2 + $0x98] sm:$0xff] %v339
      %375 = vst [vmem:[#allocation2 + $0xa0] sm:$0xff] %v268
      %376 = vst [vmem:[#allocation2 + $0xa8] sm:$0xff] %v270
      %377 = vst [vmem:[#allocation2 + $0xb0] sm:$0xff] %v341
      %378 = vst [vmem:[#allocation2 + $0xb8] sm:$0xff] %v343
      %379 = vst [vmem:[#allocation2 + $0xc0] sm:$0xff] %v274
      %380 = vst [vmem:[#allocation2 + $0xc8] sm:$0xff] %v276
      %381 = vst [vmem:[#allocation2 + $0xd0] sm:$0xff] %v347
      %382 = vst [vmem:[#allocation2 + $0xd8] sm:$0xff] %v349
      %383 = vst [vmem:[#allocation2 + $0xe0] sm:$0xff] %v278
      %384 = vst [vmem:[#allocation2 + $0xe8] sm:$0xff] %v280
      %385 = vst [vmem:[#allocation2 + $0xf0] sm:$0xff] %v351
      %386 = vst [vmem:[#allocation2 + $0xf8] sm:$0xff] %v353
      %v387 = vld [vmem:[%s2] sm:$0xff]
      %v388 = vld [vmem:[#allocation12] sm:$0xff]
      %v389 = vld [vmem:[#allocation12 + $0x8] sm:$0xff]
      %v390 = vld [vmem:[#allocation12 + $0x10] sm:$0xff]
      %v391 = vld [vmem:[#allocation12 + $0x18] sm:$0xff]
      %v392 = vld [vmem:[#allocation12 + $0x20] sm:$0xff]
      %v393 = vld [vmem:[#allocation12 + $0x28] sm:$0xff]
      %v394 = vld [vmem:[#allocation12 + $0x30] sm:$0xff]
      %v395 = vld [vmem:[#allocation12 + $0x38] sm:$0xff]
      %v396 = vld [vmem:[#allocation12 + $0x40] sm:$0xff]
      %v397 = vld [vmem:[#allocation12 + $0x48] sm:$0xff]
      %v398 = vld [vmem:[#allocation12 + $0x50] sm:$0xff]
      %v399 = vld [vmem:[#allocation12 + $0x58] sm:$0xff]
      %v400 = vld [vmem:[#allocation12 + $0x60] sm:$0xff]
      %v401 = vld [vmem:[#allocation12 + $0x68] sm:$0xff]
      %v402 = vld [vmem:[#allocation12 + $0x70] sm:$0xff]
      %v403 = vld [vmem:[#allocation12 + $0x78] sm:$0xff]
      %v404 = vld [vmem:[#allocation12 + $0x80] sm:$0xff]
      %v405 = vld [vmem:[#allocation12 + $0x88] sm:$0xff]
      %v406 = vld [vmem:[#allocation12 + $0x90] sm:$0xff]
      %v407 = vld [vmem:[#allocation12 + $0x98] sm:$0xff]
      %v408 = vld [vmem:[#allocation12 + $0xa0] sm:$0xff]
      %v409 = vld [vmem:[#allocation12 + $0xa8] sm:$0xff]
      %v410 = vld [vmem:[#allocation12 + $0xb0] sm:$0xff]
      %v411 = vld [vmem:[#allocation12 + $0xb8] sm:$0xff]
      %v412 = vld [vmem:[#allocation12 + $0xc0] sm:$0xff]
      %v413 = vld [vmem:[#allocation12 + $0xc8] sm:$0xff]
      %v414 = vld [vmem:[#allocation12 + $0xd0] sm:$0xff]
      %v415 = vld [vmem:[#allocation12 + $0xd8] sm:$0xff]
      %v416 = vld [vmem:[#allocation12 + $0xe0] sm:$0xff]
      %v417 = vld [vmem:[#allocation12 + $0xe8] sm:$0xff]
      %v418 = vld [vmem:[#allocation12 + $0xf0] sm:$0xff]
      %v419 = vld [vmem:[#allocation12 + $0xf8] sm:$0xff]
      %v420 = vld [vmem:[#allocation3] sm:$0xff]
      %v421 = vld [vmem:[#allocation4] sm:$0xff]
      %s422 = smul.u32 0, 4
      %s423 = smul.addr %s422, 8
      %s424 = scalar_lea.vmem [#allocation2], %s423
      %v425 = vld [vmem:[%s424] sm:$0xff]
      %v426 = vld [vmem:[%s424 + $0x8] sm:$0xff]
      %v427 = vld [vmem:[%s424 + $0x10] sm:$0xff]
      %v428 = vld [vmem:[%s424 + $0x18] sm:$0xff]
      %v429 = vpack.c.bf16 %v420, %v420
      %v462 = vunpack.c.l.b16 %v388
      %v463 = vunpack.c.h.b16 %v388
      %v464 = vunpack.c.l.b16 %v389
      %v465 = vunpack.c.h.b16 %v389
      %v466 = vunpack.c.l.b16 %v390
      %v467 = vunpack.c.h.b16 %v390
      %v468 = vunpack.c.l.b16 %v391
      %v469 = vunpack.c.h.b16 %v391
      %v470 = vunpack.c.l.b16 %v392
      %v471 = vunpack.c.h.b16 %v392
      %v472 = vunpack.c.l.b16 %v393
      %v473 = vunpack.c.h.b16 %v393
      %v474 = vunpack.c.l.b16 %v394
      %v475 = vunpack.c.h.b16 %v394
      %v476 = vunpack.c.l.b16 %v395
      %v477 = vunpack.c.h.b16 %v395
      %v478 = vunpack.c.l.b16 %v396
      %v479 = vunpack.c.h.b16 %v396
      %v480 = vunpack.c.l.b16 %v397
      %v481 = vunpack.c.h.b16 %v397
      %v482 = vunpack.c.l.b16 %v398
      %v483 = vunpack.c.h.b16 %v398
      %v484 = vunpack.c.l.b16 %v399
      %v485 = vunpack.c.h.b16 %v399
      %v486 = vunpack.c.l.b16 %v400
      %v487 = vunpack.c.h.b16 %v400
      %v488 = vunpack.c.l.b16 %v401
      %v489 = vunpack.c.h.b16 %v401
      %v490 = vunpack.c.l.b16 %v402
      %v491 = vunpack.c.h.b16 %v402
      %v492 = vunpack.c.l.b16 %v403
      %v493 = vunpack.c.h.b16 %v403
      %v494 = vunpack.c.l.b16 %v404
      %v495 = vunpack.c.h.b16 %v404
      %v496 = vunpack.c.l.b16 %v405
      %v497 = vunpack.c.h.b16 %v405
      %v498 = vunpack.c.l.b16 %v406
      %v499 = vunpack.c.h.b16 %v406
      %v500 = vunpack.c.l.b16 %v407
      %v501 = vunpack.c.h.b16 %v407
      %v502 = vunpack.c.l.b16 %v408
      %v503 = vunpack.c.h.b16 %v408
      %v504 = vunpack.c.l.b16 %v409
      %v505 = vunpack.c.h.b16 %v409
      %v506 = vunpack.c.l.b16 %v410
      %v507 = vunpack.c.h.b16 %v410
      %v508 = vunpack.c.l.b16 %v411
      %v509 = vunpack.c.h.b16 %v411
      %v510 = vunpack.c.l.b16 %v412
      %v511 = vunpack.c.h.b16 %v412
      %v512 = vunpack.c.l.b16 %v413
      %v513 = vunpack.c.h.b16 %v413
      %v514 = vunpack.c.l.b16 %v414
      %v515 = vunpack.c.h.b16 %v414
      %v516 = vunpack.c.l.b16 %v415
      %v517 = vunpack.c.h.b16 %v415
      %v518 = vunpack.c.l.b16 %v416
      %v519 = vunpack.c.h.b16 %v416
      %v520 = vunpack.c.l.b16 %v417
      %v521 = vunpack.c.h.b16 %v417
      %v522 = vunpack.c.l.b16 %v418
      %v523 = vunpack.c.h.b16 %v418
      %v524 = vunpack.c.l.b16 %v419
      %v525 = vunpack.c.h.b16 %v419
      %v526 = vpack.c.b16 %v466, %v462
      %v527 = vpack.c.b16 %v467, %v463
      %v528 = vpack.c.b16 %v468, %v464
      %v529 = vpack.c.b16 %v469, %v465
      %v530 = vpack.c.b16 %v474, %v470
      %v531 = vpack.c.b16 %v475, %v471
      %v532 = vpack.c.b16 %v476, %v472
      %v533 = vpack.c.b16 %v477, %v473
      %v534 = vpack.c.b16 %v482, %v478
      %v535 = vpack.c.b16 %v483, %v479
      %v536 = vpack.c.b16 %v484, %v480
      %v537 = vpack.c.b16 %v485, %v481
      %v538 = vpack.c.b16 %v490, %v486
      %v539 = vpack.c.b16 %v491, %v487
      %v540 = vpack.c.b16 %v492, %v488
      %v541 = vpack.c.b16 %v493, %v489
      %v542 = vpack.c.b16 %v498, %v494
      %v543 = vpack.c.b16 %v499, %v495
      %v544 = vpack.c.b16 %v500, %v496
      %v545 = vpack.c.b16 %v501, %v497
      %v546 = vpack.c.b16 %v506, %v502
      %v547 = vpack.c.b16 %v507, %v503
      %v548 = vpack.c.b16 %v508, %v504
      %v549 = vpack.c.b16 %v509, %v505
      %v550 = vpack.c.b16 %v514, %v510
      %v551 = vpack.c.b16 %v515, %v511
      %v552 = vpack.c.b16 %v516, %v512
      %v553 = vpack.c.b16 %v517, %v513
      %v554 = vpack.c.b16 %v522, %v518
      %v555 = vpack.c.b16 %v523, %v519
      %v556 = vpack.c.b16 %v524, %v520
      %v557 = vpack.c.b16 %v525, %v521
      %590 = vmatprep.subr.bf16.mxu0 %v555
      %591 = vmatpush1.bf16.msra.mxu0 %v554
      %592 = vmatprep.subr.bf16.mxu0 %v551
      %593 = vmatpush1.bf16.msra.mxu0 %v550
      %594 = vmatprep.subr.bf16.mxu0 %v547
      %595 = vmatpush1.bf16.msra.mxu0 %v546
      %596 = vmatprep.subr.bf16.mxu0 %v543
      %597 = vmatpush1.bf16.msra.mxu0 %v542
      %598 = vmatprep.subr.bf16.mxu0 %v539
      %599 = vmatpush1.bf16.msra.mxu0 %v538
      %600 = vmatprep.subr.bf16.mxu0 %v535
      %601 = vmatpush1.bf16.msra.mxu0 %v534
      %602 = vmatprep.subr.bf16.mxu0 %v531
      %603 = vmatpush1.bf16.msra.mxu0 %v530
      %604 = vmatprep.subr.bf16.mxu0 %v527
      %605 = vmatpush1.bf16.msra.mxu0 %v526
      %606 = vmatprep.subr.bf16.mxu0 0
      %607 = vmatpush2.bf16.msra.mxu0 0
      %608 = vmatprep.subr.bf16.mxu0 0
      %609 = vmatpush2.bf16.msra.mxu0 0
      %610 = vmatprep.subr.bf16.mxu0 0
      %611 = vmatpush2.bf16.msra.mxu0 0
      %612 = vmatprep.subr.bf16.mxu0 0
      %613 = vmatpush2.bf16.msra.mxu0 0
      %614 = vmatprep.subr.bf16.mxu0 0
      %615 = vmatpush2.bf16.msra.mxu0 0
      %616 = vmatprep.subr.bf16.mxu0 0
      %617 = vmatpush2.bf16.msra.mxu0 0
      %618 = vmatprep.subr.bf16.mxu0 0
      %619 = vmatpush2.bf16.msra.mxu0 0
      %620 = vmatprep.subr.bf16.mxu0 0
      %621 = vmatpush2.bf16.msra.mxu0 0
      %622 = vmatprep.mubr.bf16.mxu0 0
      %623 = vmatmul.mubr.bf16.gmra.mxu0 %v429
      %v624 = vpop.f32.mrf.mxu0
      %v625 = vadd.f32 0.0, %v624
      %v626 = vpop.f32.mrf.mxu0
      %v627 = vadd.f32 0.0, %v626
      %v628 = vpop.f32.mrf.mxu0
      %v629 = vpop.f32.mrf.mxu0
      %630 = vdwg.mxu0
      %631 = vmatprep.subr.bf16.mxu0 %v557
      %632 = vmatpush1.bf16.msra.mxu0 %v556
      %633 = vmatprep.subr.bf16.mxu0 %v553
      %634 = vmatpush1.bf16.msra.mxu0 %v552
      %635 = vmatprep.subr.bf16.mxu0 %v549
      %636 = vmatpush1.bf16.msra.mxu0 %v548
      %637 = vmatprep.subr.bf16.mxu0 %v545
      %638 = vmatpush1.bf16.msra.mxu0 %v544
      %639 = vmatprep.subr.bf16.mxu0 %v541
      %640 = vmatpush1.bf16.msra.mxu0 %v540
      %641 = vmatprep.subr.bf16.mxu0 %v537
      %642 = vmatpush1.bf16.msra.mxu0 %v536
      %643 = vmatprep.subr.bf16.mxu0 %v533
      %644 = vmatpush1.bf16.msra.mxu0 %v532
      %645 = vmatprep.subr.bf16.mxu0 %v529
      %646 = vmatpush1.bf16.msra.mxu0 %v528
      %647 = vmatprep.subr.bf16.mxu0 0
      %648 = vmatpush2.bf16.msra.mxu0 0
      %649 = vmatprep.subr.bf16.mxu0 0
      %650 = vmatpush2.bf16.msra.mxu0 0
      %651 = vmatprep.subr.bf16.mxu0 0
      %652 = vmatpush2.bf16.msra.mxu0 0
      %653 = vmatprep.subr.bf16.mxu0 0
      %654 = vmatpush2.bf16.msra.mxu0 0
      %655 = vmatprep.subr.bf16.mxu0 0
      %656 = vmatpush2.bf16.msra.mxu0 0
      %657 = vmatprep.subr.bf16.mxu0 0
      %658 = vmatpush2.bf16.msra.mxu0 0
      %659 = vmatprep.subr.bf16.mxu0 0
      %660 = vmatpush2.bf16.msra.mxu0 0
      %661 = vmatprep.subr.bf16.mxu0 0
      %662 = vmatpush2.bf16.msra.mxu0 0
      %663 = vmatprep.mubr.bf16.mxu0 0
      %664 = vmatmul.mubr.bf16.gmra.mxu0 %v429
      %v665 = vpop.f32.mrf.mxu0
      %v666 = vadd.f32 0.0, %v665
      %v667 = vpop.f32.mrf.mxu0
      %v668 = vadd.f32 0.0, %v667
      %v669 = vpop.f32.mrf.mxu0
      %v670 = vpop.f32.mrf.mxu0
      %671 = vdwg.mxu0
      %v672 = vadd.f32 %v425, %v625
      %v673 = vadd.f32 %v426, %v627
      %v674 = vadd.f32 %v427, %v666
      %v675 = vadd.f32 %v428, %v668
      %v676 = vpack.c.bf16 %v672, %v672
      %v677 = vpack.c.bf16 %v673, %v673
      %v678 = vpack.c.bf16 %v674, %v674
      %v679 = vpack.c.bf16 %v675, %v675
      %v680 = vxor.u32 %v676, 2147516416
      %v682 = vmul.bf16 %v680, 1069105081
      %v683 = vpow.bf16.pop %v682
      %v684 = vadd.bf16 %v683, 1065369472
      %v685 = vrcp.bf16.pop %v684
      %v686 = vmul.bf16 1065369472, %v685
      %v687 = vunpack.c.l.bf16 %v686
      %v688 = vxor.u32 %v677, 2147516416
      %v690 = vmul.bf16 %v688, 1069105081
      %v691 = vpow.bf16.pop %v690
      %v692 = vadd.bf16 %v691, 1065369472
      %v693 = vrcp.bf16.pop %v692
      %v694 = vmul.bf16 1065369472, %v693
      %v695 = vunpack.c.l.bf16 %v694
      %v696 = vtanh.bf16.pop %v678
      %v697 = vunpack.c.l.bf16 %v696
      %v698 = vxor.u32 %v679, 2147516416
      %v700 = vmul.bf16 %v698, 1069105081
      %v701 = vpow.bf16.pop %v700
      %v702 = vadd.bf16 %v701, 1065369472
      %v703 = vrcp.bf16.pop %v702
      %v704 = vmul.bf16 1065369472, %v703
      %v705 = vunpack.c.l.bf16 %v704
      %v706 = vmul.f32 %v695, %v421
      %v707 = vmul.f32 %v687, %v697
      %v708 = vadd.f32 %v706, %v707
      %v709 = vtanh.pop %v708
      %v710 = vmul.f32 %v705, %v709
      %v711 = vstv %s92
      %vm712 = vcmp.lt.s32.totalorder %v711, %v387
      %v713 = vsel %vm712, 1, 0
      %714 = vset.pattern.permute.xlu0 0
      %715 = vperm.xlu0 %714, %v713
      %v716 = vpop.permute.xlu0 %715
      %vm717 = vcmp.eq.s32.totalorder %v716, 1
      %v718 = vsel %vm717, %v710, %v420
      %v719 = vsel %vm717, %v708, %v421
      %s720 = smul.u32 1, 4
      %s721 = smul.addr %s720, 8
      %s722 = scalar_lea.vmem [#allocation2], %s721
      %v723 = vld [vmem:[%s722] sm:$0xff]
      %v724 = vld [vmem:[%s722 + $0x8] sm:$0xff]
      %v725 = vld [vmem:[%s722 + $0x10] sm:$0xff]
      %v726 = vld [vmem:[%s722 + $0x18] sm:$0xff]
      %v727 = vpack.c.bf16 %v718, %v718
      %728 = vmatprep.subr.bf16.mxu0 %v555
      %729 = vmatpush1.bf16.msra.mxu0 %v554
      %730 = vmatprep.subr.bf16.mxu0 %v551
      %731 = vmatpush1.bf16.msra.mxu0 %v550
      %732 = vmatprep.subr.bf16.mxu0 %v547
      %733 = vmatpush1.bf16.msra.mxu0 %v546
      %734 = vmatprep.subr.bf16.mxu0 %v543
      %735 = vmatpush1.bf16.msra.mxu0 %v542
      %736 = vmatprep.subr.bf16.mxu0 %v539
      %737 = vmatpush1.bf16.msra.mxu0 %v538
      %738 = vmatprep.subr.bf16.mxu0 %v535
      %739 = vmatpush1.bf16.msra.mxu0 %v534
      %740 = vmatprep.subr.bf16.mxu0 %v531
      %741 = vmatpush1.bf16.msra.mxu0 %v530
      %742 = vmatprep.subr.bf16.mxu0 %v527
      %743 = vmatpush1.bf16.msra.mxu0 %v526
      %744 = vmatprep.subr.bf16.mxu0 0
      %745 = vmatpush2.bf16.msra.mxu0 0
      %746 = vmatprep.subr.bf16.mxu0 0
      %747 = vmatpush2.bf16.msra.mxu0 0
      %748 = vmatprep.subr.bf16.mxu0 0
      %749 = vmatpush2.bf16.msra.mxu0 0
      %750 = vmatprep.subr.bf16.mxu0 0
      %751 = vmatpush2.bf16.msra.mxu0 0
      %752 = vmatprep.subr.bf16.mxu0 0
      %753 = vmatpush2.bf16.msra.mxu0 0
      %754 = vmatprep.subr.bf16.mxu0 0
      %755 = vmatpush2.bf16.msra.mxu0 0
      %756 = vmatprep.subr.bf16.mxu0 0
      %757 = vmatpush2.bf16.msra.mxu0 0
      %758 = vmatprep.subr.bf16.mxu0 0
      %759 = vmatpush2.bf16.msra.mxu0 0
      %760 = vmatprep.mubr.bf16.mxu0 0
      %761 = vmatmul.mubr.bf16.gmra.mxu0 %v727
      %v762 = vpop.f32.mrf.mxu0
      %v763 = vadd.f32 0.0, %v762
      %v764 = vpop.f32.mrf.mxu0
      %v765 = vadd.f32 0.0, %v764
      %v766 = vpop.f32.mrf.mxu0
      %v767 = vpop.f32.mrf.mxu0
      %768 = vdwg.mxu0
      %769 = vmatprep.subr.bf16.mxu0 %v557
      %770 = vmatpush1.bf16.msra.mxu0 %v556
      %771 = vmatprep.subr.bf16.mxu0 %v553
      %772 = vmatpush1.bf16.msra.mxu0 %v552
      %773 = vmatprep.subr.bf16.mxu0 %v549
      %774 = vmatpush1.bf16.msra.mxu0 %v548
      %775 = vmatprep.subr.bf16.mxu0 %v545
      %776 = vmatpush1.bf16.msra.mxu0 %v544
      %777 = vmatprep.subr.bf16.mxu0 %v541
      %778 = vmatpush1.bf16.msra.mxu0 %v540
      %779 = vmatprep.subr.bf16.mxu0 %v537
      %780 = vmatpush1.bf16.msra.mxu0 %v536
      %781 = vmatprep.subr.bf16.mxu0 %v533
      %782 = vmatpush1.bf16.msra.mxu0 %v532
      %783 = vmatprep.subr.bf16.mxu0 %v529
      %784 = vmatpush1.bf16.msra.mxu0 %v528
      %785 = vmatprep.subr.bf16.mxu0 0
      %786 = vmatpush2.bf16.msra.mxu0 0
      %787 = vmatprep.subr.bf16.mxu0 0
      %788 = vmatpush2.bf16.msra.mxu0 0
      %789 = vmatprep.subr.bf16.mxu0 0
      %790 = vmatpush2.bf16.msra.mxu0 0
      %791 = vmatprep.subr.bf16.mxu0 0
      %792 = vmatpush2.bf16.msra.mxu0 0
      %793 = vmatprep.subr.bf16.mxu0 0
      %794 = vmatpush2.bf16.msra.mxu0 0
      %795 = vmatprep.subr.bf16.mxu0 0
      %796 = vmatpush2.bf16.msra.mxu0 0
      %797 = vmatprep.subr.bf16.mxu0 0
      %798 = vmatpush2.bf16.msra.mxu0 0
      %799 = vmatprep.subr.bf16.mxu0 0
      %800 = vmatpush2.bf16.msra.mxu0 0
      %801 = vmatprep.mubr.bf16.mxu0 0
      %802 = vmatmul.mubr.bf16.gmra.mxu0 %v727
      %v803 = vpop.f32.mrf.mxu0
      %v804 = vadd.f32 0.0, %v803
      %v805 = vpop.f32.mrf.mxu0
      %v806 = vadd.f32 0.0, %v805
      %v807 = vpop.f32.mrf.mxu0
      %v808 = vpop.f32.mrf.mxu0
      %809 = vdwg.mxu0
      %v810 = vadd.f32 %v723, %v763
      %v811 = vadd.f32 %v724, %v765
      %v812 = vadd.f32 %v725, %v804
      %v813 = vadd.f32 %v726, %v806
      %v814 = vpack.c.bf16 %v810, %v810
      %v815 = vpack.c.bf16 %v811, %v811
      %v816 = vpack.c.bf16 %v812, %v812
      %v817 = vpack.c.bf16 %v813, %v813
      %v818 = vxor.u32 %v814, 2147516416
      %v820 = vmul.bf16 %v818, 1069105081
      %v821 = vpow.bf16.pop %v820
      %v822 = vadd.bf16 %v821, 1065369472
      %v823 = vrcp.bf16.pop %v822
      %v824 = vmul.bf16 1065369472, %v823
      %v825 = vunpack.c.l.bf16 %v824
      %v826 = vxor.u32 %v815, 2147516416
      %v828 = vmul.bf16 %v826, 1069105081
      %v829 = vpow.bf16.pop %v828
      %v830 = vadd.bf16 %v829, 1065369472
      %v831 = vrcp.bf16.pop %v830
      %v832 = vmul.bf16 1065369472, %v831
      %v833 = vunpack.c.l.bf16 %v832
      %v834 = vtanh.bf16.pop %v816
      %v835 = vunpack.c.l.bf16 %v834
      %v836 = vxor.u32 %v817, 2147516416
      %v838 = vmul.bf16 %v836, 1069105081
      %v839 = vpow.bf16.pop %v838
      %v840 = vadd.bf16 %v839, 1065369472
      %v841 = vrcp.bf16.pop %v840
      %v842 = vmul.bf16 1065369472, %v841
      %v843 = vunpack.c.l.bf16 %v842
      %v844 = vmul.f32 %v833, %v719
      %v845 = vmul.f32 %v825, %v835
      %v846 = vadd.f32 %v844, %v845
      %v847 = vtanh.pop %v846
      %v848 = vmul.f32 %v843, %v847
      %s849 = sadd.s32 %s92, 1
      %v850 = vstv %s849
      %vm851 = vcmp.lt.s32.totalorder %v850, %v387
      %v852 = vsel %vm851, 1, 0
      %853 = vset.pattern.permute.xlu0 0
      %854 = vperm.xlu0 %853, %v852
      %v855 = vpop.permute.xlu0 %854
      %vm856 = vcmp.eq.s32.totalorder %v855, 1
      %v857 = vsel %vm856, %v848, %v718
      %v858 = vsel %vm856, %v846, %v719
      %s859 = smul.u32 2, 4
      %s860 = smul.addr %s859, 8
      %s861 = scalar_lea.vmem [#allocation2], %s860
      %v862 = vld [vmem:[%s861] sm:$0xff]
      %v863 = vld [vmem:[%s861 + $0x8] sm:$0xff]
      %v864 = vld [vmem:[%s861 + $0x10] sm:$0xff]
      %v865 = vld [vmem:[%s861 + $0x18] sm:$0xff]
      %v866 = vpack.c.bf16 %v857, %v857
      %867 = vmatprep.subr.bf16.mxu0 %v555
      %868 = vmatpush1.bf16.msra.mxu0 %v554
      %869 = vmatprep.subr.bf16.mxu0 %v551
      %870 = vmatpush1.bf16.msra.mxu0 %v550
      %871 = vmatprep.subr.bf16.mxu0 %v547
      %872 = vmatpush1.bf16.msra.mxu0 %v546
      %873 = vmatprep.subr.bf16.mxu0 %v543
      %874 = vmatpush1.bf16.msra.mxu0 %v542
      %875 = vmatprep.subr.bf16.mxu0 %v539
      %876 = vmatpush1.bf16.msra.mxu0 %v538
      %877 = vmatprep.subr.bf16.mxu0 %v535
      %878 = vmatpush1.bf16.msra.mxu0 %v534
      %879 = vmatprep.subr.bf16.mxu0 %v531
      %880 = vmatpush1.bf16.msra.mxu0 %v530
      %881 = vmatprep.subr.bf16.mxu0 %v527
      %882 = vmatpush1.bf16.msra.mxu0 %v526
      %883 = vmatprep.subr.bf16.mxu0 0
      %884 = vmatpush2.bf16.msra.mxu0 0
      %885 = vmatprep.subr.bf16.mxu0 0
      %886 = vmatpush2.bf16.msra.mxu0 0
      %887 = vmatprep.subr.bf16.mxu0 0
      %888 = vmatpush2.bf16.msra.mxu0 0
      %889 = vmatprep.subr.bf16.mxu0 0
      %890 = vmatpush2.bf16.msra.mxu0 0
      %891 = vmatprep.subr.bf16.mxu0 0
      %892 = vmatpush2.bf16.msra.mxu0 0
      %893 = vmatprep.subr.bf16.mxu0 0
      %894 = vmatpush2.bf16.msra.mxu0 0
      %895 = vmatprep.subr.bf16.mxu0 0
      %896 = vmatpush2.bf16.msra.mxu0 0
      %897 = vmatprep.subr.bf16.mxu0 0
      %898 = vmatpush2.bf16.msra.mxu0 0
      %899 = vmatprep.mubr.bf16.mxu0 0
      %900 = vmatmul.mubr.bf16.gmra.mxu0 %v866
      %v901 = vpop.f32.mrf.mxu0
      %v902 = vadd.f32 0.0, %v901
      %v903 = vpop.f32.mrf.mxu0
      %v904 = vadd.f32 0.0, %v903
      %v905 = vpop.f32.mrf.mxu0
      %v906 = vpop.f32.mrf.mxu0
      %907 = vdwg.mxu0
      %908 = vmatprep.subr.bf16.mxu0 %v557
      %909 = vmatpush1.bf16.msra.mxu0 %v556
      %910 = vmatprep.subr.bf16.mxu0 %v553
      %911 = vmatpush1.bf16.msra.mxu0 %v552
      %912 = vmatprep.subr.bf16.mxu0 %v549
      %913 = vmatpush1.bf16.msra.mxu0 %v548
      %914 = vmatprep.subr.bf16.mxu0 %v545
      %915 = vmatpush1.bf16.msra.mxu0 %v544
      %916 = vmatprep.subr.bf16.mxu0 %v541
      %917 = vmatpush1.bf16.msra.mxu0 %v540
      %918 = vmatprep.subr.bf16.mxu0 %v537
      %919 = vmatpush1.bf16.msra.mxu0 %v536
      %920 = vmatprep.subr.bf16.mxu0 %v533
      %921 = vmatpush1.bf16.msra.mxu0 %v532
      %922 = vmatprep.subr.bf16.mxu0 %v529
      %923 = vmatpush1.bf16.msra.mxu0 %v528
      %924 = vmatprep.subr.bf16.mxu0 0
      %925 = vmatpush2.bf16.msra.mxu0 0
      %926 = vmatprep.subr.bf16.mxu0 0
      %927 = vmatpush2.bf16.msra.mxu0 0
      %928 = vmatprep.subr.bf16.mxu0 0
      %929 = vmatpush2.bf16.msra.mxu0 0
      %930 = vmatprep.subr.bf16.mxu0 0
      %931 = vmatpush2.bf16.msra.mxu0 0
      %932 = vmatprep.subr.bf16.mxu0 0
      %933 = vmatpush2.bf16.msra.mxu0 0
      %934 = vmatprep.subr.bf16.mxu0 0
      %935 = vmatpush2.bf16.msra.mxu0 0
      %936 = vmatprep.subr.bf16.mxu0 0
      %937 = vmatpush2.bf16.msra.mxu0 0
      %938 = vmatprep.subr.bf16.mxu0 0
      %939 = vmatpush2.bf16.msra.mxu0 0
      %940 = vmatprep.mubr.bf16.mxu0 0
      %941 = vmatmul.mubr.bf16.gmra.mxu0 %v866
      %v942 = vpop.f32.mrf.mxu0
      %v943 = vadd.f32 0.0, %v942
      %v944 = vpop.f32.mrf.mxu0
      %v945 = vadd.f32 0.0, %v944
      %v946 = vpop.f32.mrf.mxu0
      %v947 = vpop.f32.mrf.mxu0
      %948 = vdwg.mxu0
      %v949 = vadd.f32 %v862, %v902
      %v950 = vadd.f32 %v863, %v904
      %v951 = vadd.f32 %v864, %v943
      %v952 = vadd.f32 %v865, %v945
      %v953 = vpack.c.bf16 %v949, %v949
      %v954 = vpack.c.bf16 %v950, %v950
      %v955 = vpack.c.bf16 %v951, %v951
      %v956 = vpack.c.bf16 %v952, %v952
      %v957 = vxor.u32 %v953, 2147516416
      %v959 = vmul.bf16 %v957, 1069105081
      %v960 = vpow.bf16.pop %v959
      %v961 = vadd.bf16 %v960, 1065369472
      %v962 = vrcp.bf16.pop %v961
      %v963 = vmul.bf16 1065369472, %v962
      %v964 = vunpack.c.l.bf16 %v963
      %v965 = vxor.u32 %v954, 2147516416
      %v967 = vmul.bf16 %v965, 1069105081
      %v968 = vpow.bf16.pop %v967
      %v969 = vadd.bf16 %v968, 1065369472
      %v970 = vrcp.bf16.pop %v969
      %v971 = vmul.bf16 1065369472, %v970
      %v972 = vunpack.c.l.bf16 %v971
      %v973 = vtanh.bf16.pop %v955
      %v974 = vunpack.c.l.bf16 %v973
      %v975 = vxor.u32 %v956, 2147516416
      %v977 = vmul.bf16 %v975, 1069105081
      %v978 = vpow.bf16.pop %v977
      %v979 = vadd.bf16 %v978, 1065369472
      %v980 = vrcp.bf16.pop %v979
      %v981 = vmul.bf16 1065369472, %v980
      %v982 = vunpack.c.l.bf16 %v981
      %v983 = vmul.f32 %v972, %v858
      %v984 = vmul.f32 %v964, %v974
      %v985 = vadd.f32 %v983, %v984
      %v986 = vtanh.pop %v985
      %v987 = vmul.f32 %v982, %v986
      %s988 = sadd.s32 %s92, 2
      %v989 = vstv %s988
      %vm990 = vcmp.lt.s32.totalorder %v989, %v387
      %v991 = vsel %vm990, 1, 0
      %992 = vset.pattern.permute.xlu0 0
      %993 = vperm.xlu0 %992, %v991
      %v994 = vpop.permute.xlu0 %993
      %vm995 = vcmp.eq.s32.totalorder %v994, 1
      %v996 = vsel %vm995, %v987, %v857
      %v997 = vsel %vm995, %v985, %v858
      %s998 = smul.u32 3, 4
      %s999 = smul.addr %s998, 8
      %s1000 = scalar_lea.vmem [#allocation2], %s999
      %v1001 = vld [vmem:[%s1000] sm:$0xff]
      %v1002 = vld [vmem:[%s1000 + $0x8] sm:$0xff]
      %v1003 = vld [vmem:[%s1000 + $0x10] sm:$0xff]
      %v1004 = vld [vmem:[%s1000 + $0x18] sm:$0xff]
      %v1005 = vpack.c.bf16 %v996, %v996
      %1006 = vmatprep.subr.bf16.mxu0 %v555
      %1007 = vmatpush1.bf16.msra.mxu0 %v554
      %1008 = vmatprep.subr.bf16.mxu0 %v551
      %1009 = vmatpush1.bf16.msra.mxu0 %v550
      %1010 = vmatprep.subr.bf16.mxu0 %v547
      %1011 = vmatpush1.bf16.msra.mxu0 %v546
      %1012 = vmatprep.subr.bf16.mxu0 %v543
      %1013 = vmatpush1.bf16.msra.mxu0 %v542
      %1014 = vmatprep.subr.bf16.mxu0 %v539
      %1015 = vmatpush1.bf16.msra.mxu0 %v538
      %1016 = vmatprep.subr.bf16.mxu0 %v535
      %1017 = vmatpush1.bf16.msra.mxu0 %v534
      %1018 = vmatprep.subr.bf16.mxu0 %v531
      %1019 = vmatpush1.bf16.msra.mxu0 %v530
      %1020 = vmatprep.subr.bf16.mxu0 %v527
      %1021 = vmatpush1.bf16.msra.mxu0 %v526
      %1022 = vmatprep.subr.bf16.mxu0 0
      %1023 = vmatpush2.bf16.msra.mxu0 0
      %1024 = vmatprep.subr.bf16.mxu0 0
      %1025 = vmatpush2.bf16.msra.mxu0 0
      %1026 = vmatprep.subr.bf16.mxu0 0
      %1027 = vmatpush2.bf16.msra.mxu0 0
      %1028 = vmatprep.subr.bf16.mxu0 0
      %1029 = vmatpush2.bf16.msra.mxu0 0
      %1030 = vmatprep.subr.bf16.mxu0 0
      %1031 = vmatpush2.bf16.msra.mxu0 0
      %1032 = vmatprep.subr.bf16.mxu0 0
      %1033 = vmatpush2.bf16.msra.mxu0 0
      %1034 = vmatprep.subr.bf16.mxu0 0
      %1035 = vmatpush2.bf16.msra.mxu0 0
      %1036 = vmatprep.subr.bf16.mxu0 0
      %1037 = vmatpush2.bf16.msra.mxu0 0
      %1038 = vmatprep.mubr.bf16.mxu0 0
      %1039 = vmatmul.mubr.bf16.gmra.mxu0 %v1005
      %v1040 = vpop.f32.mrf.mxu0
      %v1041 = vadd.f32 0.0, %v1040
      %v1042 = vpop.f32.mrf.mxu0
      %v1043 = vadd.f32 0.0, %v1042
      %v1044 = vpop.f32.mrf.mxu0
      %v1045 = vpop.f32.mrf.mxu0
      %1046 = vdwg.mxu0
      %1047 = vmatprep.subr.bf16.mxu0 %v557
      %1048 = vmatpush1.bf16.msra.mxu0 %v556
      %1049 = vmatprep.subr.bf16.mxu0 %v553
      %1050 = vmatpush1.bf16.msra.mxu0 %v552
      %1051 = vmatprep.subr.bf16.mxu0 %v549
      %1052 = vmatpush1.bf16.msra.mxu0 %v548
      %1053 = vmatprep.subr.bf16.mxu0 %v545
      %1054 = vmatpush1.bf16.msra.mxu0 %v544
      %1055 = vmatprep.subr.bf16.mxu0 %v541
      %1056 = vmatpush1.bf16.msra.mxu0 %v540
      %1057 = vmatprep.subr.bf16.mxu0 %v537
      %1058 = vmatpush1.bf16.msra.mxu0 %v536
      %1059 = vmatprep.subr.bf16.mxu0 %v533
      %1060 = vmatpush1.bf16.msra.mxu0 %v532
      %1061 = vmatprep.subr.bf16.mxu0 %v529
      %1062 = vmatpush1.bf16.msra.mxu0 %v528
      %1063 = vmatprep.subr.bf16.mxu0 0
      %1064 = vmatpush2.bf16.msra.mxu0 0
      %1065 = vmatprep.subr.bf16.mxu0 0
      %1066 = vmatpush2.bf16.msra.mxu0 0
      %1067 = vmatprep.subr.bf16.mxu0 0
      %1068 = vmatpush2.bf16.msra.mxu0 0
      %1069 = vmatprep.subr.bf16.mxu0 0
      %1070 = vmatpush2.bf16.msra.mxu0 0
      %1071 = vmatprep.subr.bf16.mxu0 0
      %1072 = vmatpush2.bf16.msra.mxu0 0
      %1073 = vmatprep.subr.bf16.mxu0 0
      %1074 = vmatpush2.bf16.msra.mxu0 0
      %1075 = vmatprep.subr.bf16.mxu0 0
      %1076 = vmatpush2.bf16.msra.mxu0 0
      %1077 = vmatprep.subr.bf16.mxu0 0
      %1078 = vmatpush2.bf16.msra.mxu0 0
      %1079 = vmatprep.mubr.bf16.mxu0 0
      %1080 = vmatmul.mubr.bf16.gmra.mxu0 %v1005
      %v1081 = vpop.f32.mrf.mxu0
      %v1082 = vadd.f32 0.0, %v1081
      %v1083 = vpop.f32.mrf.mxu0
      %v1084 = vadd.f32 0.0, %v1083
      %v1085 = vpop.f32.mrf.mxu0
      %v1086 = vpop.f32.mrf.mxu0
      %1087 = vdwg.mxu0
      %v1088 = vadd.f32 %v1001, %v1041
      %v1089 = vadd.f32 %v1002, %v1043
      %v1090 = vadd.f32 %v1003, %v1082
      %v1091 = vadd.f32 %v1004, %v1084
      %v1092 = vpack.c.bf16 %v1088, %v1088
      %v1093 = vpack.c.bf16 %v1089, %v1089
      %v1094 = vpack.c.bf16 %v1090, %v1090
      %v1095 = vpack.c.bf16 %v1091, %v1091
      %v1096 = vxor.u32 %v1092, 2147516416
      %v1098 = vmul.bf16 %v1096, 1069105081
      %v1099 = vpow.bf16.pop %v1098
      %v1100 = vadd.bf16 %v1099, 1065369472
      %v1101 = vrcp.bf16.pop %v1100
      %v1102 = vmul.bf16 1065369472, %v1101
      %v1103 = vunpack.c.l.bf16 %v1102
      %v1104 = vxor.u32 %v1093, 2147516416
      %v1106 = vmul.bf16 %v1104, 1069105081
      %v1107 = vpow.bf16.pop %v1106
      %v1108 = vadd.bf16 %v1107, 1065369472
      %v1109 = vrcp.bf16.pop %v1108
      %v1110 = vmul.bf16 1065369472, %v1109
      %v1111 = vunpack.c.l.bf16 %v1110
      %v1112 = vtanh.bf16.pop %v1094
      %v1113 = vunpack.c.l.bf16 %v1112
      %v1114 = vxor.u32 %v1095, 2147516416
      %v1116 = vmul.bf16 %v1114, 1069105081
      %v1117 = vpow.bf16.pop %v1116
      %v1118 = vadd.bf16 %v1117, 1065369472
      %v1119 = vrcp.bf16.pop %v1118
      %v1120 = vmul.bf16 1065369472, %v1119
      %v1121 = vunpack.c.l.bf16 %v1120
      %v1122 = vmul.f32 %v1111, %v997
      %v1123 = vmul.f32 %v1103, %v1113
      %v1124 = vadd.f32 %v1122, %v1123
      %v1125 = vtanh.pop %v1124
      %v1126 = vmul.f32 %v1121, %v1125
      %s1127 = sadd.s32 %s92, 3
      %v1128 = vstv %s1127
      %vm1129 = vcmp.lt.s32.totalorder %v1128, %v387
      %v1130 = vsel %vm1129, 1, 0
      %1131 = vset.pattern.permute.xlu0 0
      %1132 = vperm.xlu0 %1131, %v1130
      %v1133 = vpop.permute.xlu0 %1132
      %vm1134 = vcmp.eq.s32.totalorder %v1133, 1
      %v1135 = vsel %vm1134, %v1126, %v996
      %v1136 = vsel %vm1134, %v1124, %v997
      %s1137 = smul.u32 4, 4
      %s1138 = smul.addr %s1137, 8
      %s1139 = scalar_lea.vmem [#allocation2], %s1138
      %v1140 = vld [vmem:[%s1139] sm:$0xff]
      %v1141 = vld [vmem:[%s1139 + $0x8] sm:$0xff]
      %v1142 = vld [vmem:[%s1139 + $0x10] sm:$0xff]
      %v1143 = vld [vmem:[%s1139 + $0x18] sm:$0xff]
      %v1144 = vpack.c.bf16 %v1135, %v1135
      %1145 = vmatprep.subr.bf16.mxu0 %v555
      %1146 = vmatpush1.bf16.msra.mxu0 %v554
      %1147 = vmatprep.subr.bf16.mxu0 %v551
      %1148 = vmatpush1.bf16.msra.mxu0 %v550
      %1149 = vmatprep.subr.bf16.mxu0 %v547
      %1150 = vmatpush1.bf16.msra.mxu0 %v546
      %1151 = vmatprep.subr.bf16.mxu0 %v543
      %1152 = vmatpush1.bf16.msra.mxu0 %v542
      %1153 = vmatprep.subr.bf16.mxu0 %v539
      %1154 = vmatpush1.bf16.msra.mxu0 %v538
      %1155 = vmatprep.subr.bf16.mxu0 %v535
      %1156 = vmatpush1.bf16.msra.mxu0 %v534
      %1157 = vmatprep.subr.bf16.mxu0 %v531
      %1158 = vmatpush1.bf16.msra.mxu0 %v530
      %1159 = vmatprep.subr.bf16.mxu0 %v527
      %1160 = vmatpush1.bf16.msra.mxu0 %v526
      %1161 = vmatprep.subr.bf16.mxu0 0
      %1162 = vmatpush2.bf16.msra.mxu0 0
      %1163 = vmatprep.subr.bf16.mxu0 0
      %1164 = vmatpush2.bf16.msra.mxu0 0
      %1165 = vmatprep.subr.bf16.mxu0 0
      %1166 = vmatpush2.bf16.msra.mxu0 0
      %1167 = vmatprep.subr.bf16.mxu0 0
      %1168 = vmatpush2.bf16.msra.mxu0 0
      %1169 = vmatprep.subr.bf16.mxu0 0
      %1170 = vmatpush2.bf16.msra.mxu0 0
      %1171 = vmatprep.subr.bf16.mxu0 0
      %1172 = vmatpush2.bf16.msra.mxu0 0
      %1173 = vmatprep.subr.bf16.mxu0 0
      %1174 = vmatpush2.bf16.msra.mxu0 0
      %1175 = vmatprep.subr.bf16.mxu0 0
      %1176 = vmatpush2.bf16.msra.mxu0 0
      %1177 = vmatprep.mubr.bf16.mxu0 0
      %1178 = vmatmul.mubr.bf16.gmra.mxu0 %v1144
      %v1179 = vpop.f32.mrf.mxu0
      %v1180 = vadd.f32 0.0, %v1179
      %v1181 = vpop.f32.mrf.mxu0
      %v1182 = vadd.f32 0.0, %v1181
      %v1183 = vpop.f32.mrf.mxu0
      %v1184 = vpop.f32.mrf.mxu0
      %1185 = vdwg.mxu0
      %1186 = vmatprep.subr.bf16.mxu0 %v557
      %1187 = vmatpush1.bf16.msra.mxu0 %v556
      %1188 = vmatprep.subr.bf16.mxu0 %v553
      %1189 = vmatpush1.bf16.msra.mxu0 %v552
      %1190 = vmatprep.subr.bf16.mxu0 %v549
      %1191 = vmatpush1.bf16.msra.mxu0 %v548
      %1192 = vmatprep.subr.bf16.mxu0 %v545
      %1193 = vmatpush1.bf16.msra.mxu0 %v544
      %1194 = vmatprep.subr.bf16.mxu0 %v541
      %1195 = vmatpush1.bf16.msra.mxu0 %v540
      %1196 = vmatprep.subr.bf16.mxu0 %v537
      %1197 = vmatpush1.bf16.msra.mxu0 %v536
      %1198 = vmatprep.subr.bf16.mxu0 %v533
      %1199 = vmatpush1.bf16.msra.mxu0 %v532
      %1200 = vmatprep.subr.bf16.mxu0 %v529
      %1201 = vmatpush1.bf16.msra.mxu0 %v528
      %1202 = vmatprep.subr.bf16.mxu0 0
      %1203 = vmatpush2.bf16.msra.mxu0 0
      %1204 = vmatprep.subr.bf16.mxu0 0
      %1205 = vmatpush2.bf16.msra.mxu0 0
      %1206 = vmatprep.subr.bf16.mxu0 0
      %1207 = vmatpush2.bf16.msra.mxu0 0
      %1208 = vmatprep.subr.bf16.mxu0 0
      %1209 = vmatpush2.bf16.msra.mxu0 0
      %1210 = vmatprep.subr.bf16.mxu0 0
      %1211 = vmatpush2.bf16.msra.mxu0 0
      %1212 = vmatprep.subr.bf16.mxu0 0
      %1213 = vmatpush2.bf16.msra.mxu0 0
      %1214 = vmatprep.subr.bf16.mxu0 0
      %1215 = vmatpush2.bf16.msra.mxu0 0
      %1216 = vmatprep.subr.bf16.mxu0 0
      %1217 = vmatpush2.bf16.msra.mxu0 0
      %1218 = vmatprep.mubr.bf16.mxu0 0
      %1219 = vmatmul.mubr.bf16.gmra.mxu0 %v1144
      %v1220 = vpop.f32.mrf.mxu0
      %v1221 = vadd.f32 0.0, %v1220
      %v1222 = vpop.f32.mrf.mxu0
      %v1223 = vadd.f32 0.0, %v1222
      %v1224 = vpop.f32.mrf.mxu0
      %v1225 = vpop.f32.mrf.mxu0
      %1226 = vdwg.mxu0
      %v1227 = vadd.f32 %v1140, %v1180
      %v1228 = vadd.f32 %v1141, %v1182
      %v1229 = vadd.f32 %v1142, %v1221
      %v1230 = vadd.f32 %v1143, %v1223
      %v1231 = vpack.c.bf16 %v1227, %v1227
      %v1232 = vpack.c.bf16 %v1228, %v1228
      %v1233 = vpack.c.bf16 %v1229, %v1229
      %v1234 = vpack.c.bf16 %v1230, %v1230
      %v1235 = vxor.u32 %v1231, 2147516416
      %v1237 = vmul.bf16 %v1235, 1069105081
      %v1238 = vpow.bf16.pop %v1237
      %v1239 = vadd.bf16 %v1238, 1065369472
      %v1240 = vrcp.bf16.pop %v1239
      %v1241 = vmul.bf16 1065369472, %v1240
      %v1242 = vunpack.c.l.bf16 %v1241
      %v1243 = vxor.u32 %v1232, 2147516416
      %v1245 = vmul.bf16 %v1243, 1069105081
      %v1246 = vpow.bf16.pop %v1245
      %v1247 = vadd.bf16 %v1246, 1065369472
      %v1248 = vrcp.bf16.pop %v1247
      %v1249 = vmul.bf16 1065369472, %v1248
      %v1250 = vunpack.c.l.bf16 %v1249
      %v1251 = vtanh.bf16.pop %v1233
      %v1252 = vunpack.c.l.bf16 %v1251
      %v1253 = vxor.u32 %v1234, 2147516416
      %v1255 = vmul.bf16 %v1253, 1069105081
      %v1256 = vpow.bf16.pop %v1255
      %v1257 = vadd.bf16 %v1256, 1065369472
      %v1258 = vrcp.bf16.pop %v1257
      %v1259 = vmul.bf16 1065369472, %v1258
      %v1260 = vunpack.c.l.bf16 %v1259
      %v1261 = vmul.f32 %v1250, %v1136
      %v1262 = vmul.f32 %v1242, %v1252
      %v1263 = vadd.f32 %v1261, %v1262
      %v1264 = vtanh.pop %v1263
      %v1265 = vmul.f32 %v1260, %v1264
      %s1266 = sadd.s32 %s92, 4
      %v1267 = vstv %s1266
      %vm1268 = vcmp.lt.s32.totalorder %v1267, %v387
      %v1269 = vsel %vm1268, 1, 0
      %1270 = vset.pattern.permute.xlu0 0
      %1271 = vperm.xlu0 %1270, %v1269
      %v1272 = vpop.permute.xlu0 %1271
      %vm1273 = vcmp.eq.s32.totalorder %v1272, 1
      %v1274 = vsel %vm1273, %v1265, %v1135
      %v1275 = vsel %vm1273, %v1263, %v1136
      %s1276 = smul.u32 5, 4
      %s1277 = smul.addr %s1276, 8
      %s1278 = scalar_lea.vmem [#allocation2], %s1277
      %v1279 = vld [vmem:[%s1278] sm:$0xff]
      %v1280 = vld [vmem:[%s1278 + $0x8] sm:$0xff]
      %v1281 = vld [vmem:[%s1278 + $0x10] sm:$0xff]
      %v1282 = vld [vmem:[%s1278 + $0x18] sm:$0xff]
      %v1283 = vpack.c.bf16 %v1274, %v1274
      %1284 = vmatprep.subr.bf16.mxu0 %v555
      %1285 = vmatpush1.bf16.msra.mxu0 %v554
      %1286 = vmatprep.subr.bf16.mxu0 %v551
      %1287 = vmatpush1.bf16.msra.mxu0 %v550
      %1288 = vmatprep.subr.bf16.mxu0 %v547
      %1289 = vmatpush1.bf16.msra.mxu0 %v546
      %1290 = vmatprep.subr.bf16.mxu0 %v543
      %1291 = vmatpush1.bf16.msra.mxu0 %v542
      %1292 = vmatprep.subr.bf16.mxu0 %v539
      %1293 = vmatpush1.bf16.msra.mxu0 %v538
      %1294 = vmatprep.subr.bf16.mxu0 %v535
      %1295 = vmatpush1.bf16.msra.mxu0 %v534
      %1296 = vmatprep.subr.bf16.mxu0 %v531
      %1297 = vmatpush1.bf16.msra.mxu0 %v530
      %1298 = vmatprep.subr.bf16.mxu0 %v527
      %1299 = vmatpush1.bf16.msra.mxu0 %v526
      %1300 = vmatprep.subr.bf16.mxu0 0
      %1301 = vmatpush2.bf16.msra.mxu0 0
      %1302 = vmatprep.subr.bf16.mxu0 0
      %1303 = vmatpush2.bf16.msra.mxu0 0
      %1304 = vmatprep.subr.bf16.mxu0 0
      %1305 = vmatpush2.bf16.msra.mxu0 0
      %1306 = vmatprep.subr.bf16.mxu0 0
      %1307 = vmatpush2.bf16.msra.mxu0 0
      %1308 = vmatprep.subr.bf16.mxu0 0
      %1309 = vmatpush2.bf16.msra.mxu0 0
      %1310 = vmatprep.subr.bf16.mxu0 0
      %1311 = vmatpush2.bf16.msra.mxu0 0
      %1312 = vmatprep.subr.bf16.mxu0 0
      %1313 = vmatpush2.bf16.msra.mxu0 0
      %1314 = vmatprep.subr.bf16.mxu0 0
      %1315 = vmatpush2.bf16.msra.mxu0 0
      %1316 = vmatprep.mubr.bf16.mxu0 0
      %1317 = vmatmul.mubr.bf16.gmra.mxu0 %v1283
      %v1318 = vpop.f32.mrf.mxu0
      %v1319 = vadd.f32 0.0, %v1318
      %v1320 = vpop.f32.mrf.mxu0
      %v1321 = vadd.f32 0.0, %v1320
      %v1322 = vpop.f32.mrf.mxu0
      %v1323 = vpop.f32.mrf.mxu0
      %1324 = vdwg.mxu0
      %1325 = vmatprep.subr.bf16.mxu0 %v557
      %1326 = vmatpush1.bf16.msra.mxu0 %v556
      %1327 = vmatprep.subr.bf16.mxu0 %v553
      %1328 = vmatpush1.bf16.msra.mxu0 %v552
      %1329 = vmatprep.subr.bf16.mxu0 %v549
      %1330 = vmatpush1.bf16.msra.mxu0 %v548
      %1331 = vmatprep.subr.bf16.mxu0 %v545
      %1332 = vmatpush1.bf16.msra.mxu0 %v544
      %1333 = vmatprep.subr.bf16.mxu0 %v541
      %1334 = vmatpush1.bf16.msra.mxu0 %v540
      %1335 = vmatprep.subr.bf16.mxu0 %v537
      %1336 = vmatpush1.bf16.msra.mxu0 %v536
      %1337 = vmatprep.subr.bf16.mxu0 %v533
      %1338 = vmatpush1.bf16.msra.mxu0 %v532
      %1339 = vmatprep.subr.bf16.mxu0 %v529
      %1340 = vmatpush1.bf16.msra.mxu0 %v528
      %1341 = vmatprep.subr.bf16.mxu0 0
      %1342 = vmatpush2.bf16.msra.mxu0 0
      %1343 = vmatprep.subr.bf16.mxu0 0
      %1344 = vmatpush2.bf16.msra.mxu0 0
      %1345 = vmatprep.subr.bf16.mxu0 0
      %1346 = vmatpush2.bf16.msra.mxu0 0
      %1347 = vmatprep.subr.bf16.mxu0 0
      %1348 = vmatpush2.bf16.msra.mxu0 0
      %1349 = vmatprep.subr.bf16.mxu0 0
      %1350 = vmatpush2.bf16.msra.mxu0 0
      %1351 = vmatprep.subr.bf16.mxu0 0
      %1352 = vmatpush2.bf16.msra.mxu0 0
      %1353 = vmatprep.subr.bf16.mxu0 0
      %1354 = vmatpush2.bf16.msra.mxu0 0
      %1355 = vmatprep.subr.bf16.mxu0 0
      %1356 = vmatpush2.bf16.msra.mxu0 0
      %1357 = vmatprep.mubr.bf16.mxu0 0
      %1358 = vmatmul.mubr.bf16.gmra.mxu0 %v1283
      %v1359 = vpop.f32.mrf.mxu0
      %v1360 = vadd.f32 0.0, %v1359
      %v1361 = vpop.f32.mrf.mxu0
      %v1362 = vadd.f32 0.0, %v1361
      %v1363 = vpop.f32.mrf.mxu0
      %v1364 = vpop.f32.mrf.mxu0
      %1365 = vdwg.mxu0
      %v1366 = vadd.f32 %v1279, %v1319
      %v1367 = vadd.f32 %v1280, %v1321
      %v1368 = vadd.f32 %v1281, %v1360
      %v1369 = vadd.f32 %v1282, %v1362
      %v1370 = vpack.c.bf16 %v1366, %v1366
      %v1371 = vpack.c.bf16 %v1367, %v1367
      %v1372 = vpack.c.bf16 %v1368, %v1368
      %v1373 = vpack.c.bf16 %v1369, %v1369
      %v1374 = vxor.u32 %v1370, 2147516416
      %v1376 = vmul.bf16 %v1374, 1069105081
      %v1377 = vpow.bf16.pop %v1376
      %v1378 = vadd.bf16 %v1377, 1065369472
      %v1379 = vrcp.bf16.pop %v1378
      %v1380 = vmul.bf16 1065369472, %v1379
      %v1381 = vunpack.c.l.bf16 %v1380
      %v1382 = vxor.u32 %v1371, 2147516416
      %v1384 = vmul.bf16 %v1382, 1069105081
      %v1385 = vpow.bf16.pop %v1384
      %v1386 = vadd.bf16 %v1385, 1065369472
      %v1387 = vrcp.bf16.pop %v1386
      %v1388 = vmul.bf16 1065369472, %v1387
      %v1389 = vunpack.c.l.bf16 %v1388
      %v1390 = vtanh.bf16.pop %v1372
      %v1391 = vunpack.c.l.bf16 %v1390
      %v1392 = vxor.u32 %v1373, 2147516416
      %v1394 = vmul.bf16 %v1392, 1069105081
      %v1395 = vpow.bf16.pop %v1394
      %v1396 = vadd.bf16 %v1395, 1065369472
      %v1397 = vrcp.bf16.pop %v1396
      %v1398 = vmul.bf16 1065369472, %v1397
      %v1399 = vunpack.c.l.bf16 %v1398
      %v1400 = vmul.f32 %v1389, %v1275
      %v1401 = vmul.f32 %v1381, %v1391
      %v1402 = vadd.f32 %v1400, %v1401
      %v1403 = vtanh.pop %v1402
      %v1404 = vmul.f32 %v1399, %v1403
      %s1405 = sadd.s32 %s92, 5
      %v1406 = vstv %s1405
      %vm1407 = vcmp.lt.s32.totalorder %v1406, %v387
      %v1408 = vsel %vm1407, 1, 0
      %1409 = vset.pattern.permute.xlu0 0
      %1410 = vperm.xlu0 %1409, %v1408
      %v1411 = vpop.permute.xlu0 %1410
      %vm1412 = vcmp.eq.s32.totalorder %v1411, 1
      %v1413 = vsel %vm1412, %v1404, %v1274
      %v1414 = vsel %vm1412, %v1402, %v1275
      %s1415 = smul.u32 6, 4
      %s1416 = smul.addr %s1415, 8
      %s1417 = scalar_lea.vmem [#allocation2], %s1416
      %v1418 = vld [vmem:[%s1417] sm:$0xff]
      %v1419 = vld [vmem:[%s1417 + $0x8] sm:$0xff]
      %v1420 = vld [vmem:[%s1417 + $0x10] sm:$0xff]
      %v1421 = vld [vmem:[%s1417 + $0x18] sm:$0xff]
      %v1422 = vpack.c.bf16 %v1413, %v1413
      %1423 = vmatprep.subr.bf16.mxu0 %v555
      %1424 = vmatpush1.bf16.msra.mxu0 %v554
      %1425 = vmatprep.subr.bf16.mxu0 %v551
      %1426 = vmatpush1.bf16.msra.mxu0 %v550
      %1427 = vmatprep.subr.bf16.mxu0 %v547
      %1428 = vmatpush1.bf16.msra.mxu0 %v546
      %1429 = vmatprep.subr.bf16.mxu0 %v543
      %1430 = vmatpush1.bf16.msra.mxu0 %v542
      %1431 = vmatprep.subr.bf16.mxu0 %v539
      %1432 = vmatpush1.bf16.msra.mxu0 %v538
      %1433 = vmatprep.subr.bf16.mxu0 %v535
      %1434 = vmatpush1.bf16.msra.mxu0 %v534
      %1435 = vmatprep.subr.bf16.mxu0 %v531
      %1436 = vmatpush1.bf16.msra.mxu0 %v530
      %1437 = vmatprep.subr.bf16.mxu0 %v527
      %1438 = vmatpush1.bf16.msra.mxu0 %v526
      %1439 = vmatprep.subr.bf16.mxu0 0
      %1440 = vmatpush2.bf16.msra.mxu0 0
      %1441 = vmatprep.subr.bf16.mxu0 0
      %1442 = vmatpush2.bf16.msra.mxu0 0
      %1443 = vmatprep.subr.bf16.mxu0 0
      %1444 = vmatpush2.bf16.msra.mxu0 0
      %1445 = vmatprep.subr.bf16.mxu0 0
      %1446 = vmatpush2.bf16.msra.mxu0 0
      %1447 = vmatprep.subr.bf16.mxu0 0
      %1448 = vmatpush2.bf16.msra.mxu0 0
      %1449 = vmatprep.subr.bf16.mxu0 0
      %1450 = vmatpush2.bf16.msra.mxu0 0
      %1451 = vmatprep.subr.bf16.mxu0 0
      %1452 = vmatpush2.bf16.msra.mxu0 0
      %1453 = vmatprep.subr.bf16.mxu0 0
      %1454 = vmatpush2.bf16.msra.mxu0 0
      %1455 = vmatprep.mubr.bf16.mxu0 0
      %1456 = vmatmul.mubr.bf16.gmra.mxu0 %v1422
      %v1457 = vpop.f32.mrf.mxu0
      %v1458 = vadd.f32 0.0, %v1457
      %v1459 = vpop.f32.mrf.mxu0
      %v1460 = vadd.f32 0.0, %v1459
      %v1461 = vpop.f32.mrf.mxu0
      %v1462 = vpop.f32.mrf.mxu0
      %1463 = vdwg.mxu0
      %1464 = vmatprep.subr.bf16.mxu0 %v557
      %1465 = vmatpush1.bf16.msra.mxu0 %v556
      %1466 = vmatprep.subr.bf16.mxu0 %v553
      %1467 = vmatpush1.bf16.msra.mxu0 %v552
      %1468 = vmatprep.subr.bf16.mxu0 %v549
      %1469 = vmatpush1.bf16.msra.mxu0 %v548
      %1470 = vmatprep.subr.bf16.mxu0 %v545
      %1471 = vmatpush1.bf16.msra.mxu0 %v544
      %1472 = vmatprep.subr.bf16.mxu0 %v541
      %1473 = vmatpush1.bf16.msra.mxu0 %v540
      %1474 = vmatprep.subr.bf16.mxu0 %v537
      %1475 = vmatpush1.bf16.msra.mxu0 %v536
      %1476 = vmatprep.subr.bf16.mxu0 %v533
      %1477 = vmatpush1.bf16.msra.mxu0 %v532
      %1478 = vmatprep.subr.bf16.mxu0 %v529
      %1479 = vmatpush1.bf16.msra.mxu0 %v528
      %1480 = vmatprep.subr.bf16.mxu0 0
      %1481 = vmatpush2.bf16.msra.mxu0 0
      %1482 = vmatprep.subr.bf16.mxu0 0
      %1483 = vmatpush2.bf16.msra.mxu0 0
      %1484 = vmatprep.subr.bf16.mxu0 0
      %1485 = vmatpush2.bf16.msra.mxu0 0
      %1486 = vmatprep.subr.bf16.mxu0 0
      %1487 = vmatpush2.bf16.msra.mxu0 0
      %1488 = vmatprep.subr.bf16.mxu0 0
      %1489 = vmatpush2.bf16.msra.mxu0 0
      %1490 = vmatprep.subr.bf16.mxu0 0
      %1491 = vmatpush2.bf16.msra.mxu0 0
      %1492 = vmatprep.subr.bf16.mxu0 0
      %1493 = vmatpush2.bf16.msra.mxu0 0
      %1494 = vmatprep.subr.bf16.mxu0 0
      %1495 = vmatpush2.bf16.msra.mxu0 0
      %1496 = vmatprep.mubr.bf16.mxu0 0
      %1497 = vmatmul.mubr.bf16.gmra.mxu0 %v1422
      %v1498 = vpop.f32.mrf.mxu0
      %v1499 = vadd.f32 0.0, %v1498
      %v1500 = vpop.f32.mrf.mxu0
      %v1501 = vadd.f32 0.0, %v1500
      %v1502 = vpop.f32.mrf.mxu0
      %v1503 = vpop.f32.mrf.mxu0
      %1504 = vdwg.mxu0
      %v1505 = vadd.f32 %v1418, %v1458
      %v1506 = vadd.f32 %v1419, %v1460
      %v1507 = vadd.f32 %v1420, %v1499
      %v1508 = vadd.f32 %v1421, %v1501
      %v1509 = vpack.c.bf16 %v1505, %v1505
      %v1510 = vpack.c.bf16 %v1506, %v1506
      %v1511 = vpack.c.bf16 %v1507, %v1507
      %v1512 = vpack.c.bf16 %v1508, %v1508
      %v1513 = vxor.u32 %v1509, 2147516416
      %v1515 = vmul.bf16 %v1513, 1069105081
      %v1516 = vpow.bf16.pop %v1515
      %v1517 = vadd.bf16 %v1516, 1065369472
      %v1518 = vrcp.bf16.pop %v1517
      %v1519 = vmul.bf16 1065369472, %v1518
      %v1520 = vunpack.c.l.bf16 %v1519
      %v1521 = vxor.u32 %v1510, 2147516416
      %v1523 = vmul.bf16 %v1521, 1069105081
      %v1524 = vpow.bf16.pop %v1523
      %v1525 = vadd.bf16 %v1524, 1065369472
      %v1526 = vrcp.bf16.pop %v1525
      %v1527 = vmul.bf16 1065369472, %v1526
      %v1528 = vunpack.c.l.bf16 %v1527
      %v1529 = vtanh.bf16.pop %v1511
      %v1530 = vunpack.c.l.bf16 %v1529
      %v1531 = vxor.u32 %v1512, 2147516416
      %v1533 = vmul.bf16 %v1531, 1069105081
      %v1534 = vpow.bf16.pop %v1533
      %v1535 = vadd.bf16 %v1534, 1065369472
      %v1536 = vrcp.bf16.pop %v1535
      %v1537 = vmul.bf16 1065369472, %v1536
      %v1538 = vunpack.c.l.bf16 %v1537
      %v1539 = vmul.f32 %v1528, %v1414
      %v1540 = vmul.f32 %v1520, %v1530
      %v1541 = vadd.f32 %v1539, %v1540
      %v1542 = vtanh.pop %v1541
      %v1543 = vmul.f32 %v1538, %v1542
      %s1544 = sadd.s32 %s92, 6
      %v1545 = vstv %s1544
      %vm1546 = vcmp.lt.s32.totalorder %v1545, %v387
      %v1547 = vsel %vm1546, 1, 0
      %1548 = vset.pattern.permute.xlu0 0
      %1549 = vperm.xlu0 %1548, %v1547
      %v1550 = vpop.permute.xlu0 %1549
      %vm1551 = vcmp.eq.s32.totalorder %v1550, 1
      %v1552 = vsel %vm1551, %v1543, %v1413
      %v1553 = vsel %vm1551, %v1541, %v1414
      %s1554 = smul.u32 7, 4
      %s1555 = smul.addr %s1554, 8
      %s1556 = scalar_lea.vmem [#allocation2], %s1555
      %v1557 = vld [vmem:[%s1556] sm:$0xff]
      %v1558 = vld [vmem:[%s1556 + $0x8] sm:$0xff]
      %v1559 = vld [vmem:[%s1556 + $0x10] sm:$0xff]
      %v1560 = vld [vmem:[%s1556 + $0x18] sm:$0xff]
      %v1561 = vpack.c.bf16 %v1552, %v1552
      %1562 = vmatprep.subr.bf16.mxu0 %v555
      %1563 = vmatpush1.bf16.msra.mxu0 %v554
      %1564 = vmatprep.subr.bf16.mxu0 %v551
      %1565 = vmatpush1.bf16.msra.mxu0 %v550
      %1566 = vmatprep.subr.bf16.mxu0 %v547
      %1567 = vmatpush1.bf16.msra.mxu0 %v546
      %1568 = vmatprep.subr.bf16.mxu0 %v543
      %1569 = vmatpush1.bf16.msra.mxu0 %v542
      %1570 = vmatprep.subr.bf16.mxu0 %v539
      %1571 = vmatpush1.bf16.msra.mxu0 %v538
      %1572 = vmatprep.subr.bf16.mxu0 %v535
      %1573 = vmatpush1.bf16.msra.mxu0 %v534
      %1574 = vmatprep.subr.bf16.mxu0 %v531
      %1575 = vmatpush1.bf16.msra.mxu0 %v530
      %1576 = vmatprep.subr.bf16.mxu0 %v527
      %1577 = vmatpush1.bf16.msra.mxu0 %v526
      %1578 = vmatprep.subr.bf16.mxu0 0
      %1579 = vmatpush2.bf16.msra.mxu0 0
      %1580 = vmatprep.subr.bf16.mxu0 0
      %1581 = vmatpush2.bf16.msra.mxu0 0
      %1582 = vmatprep.subr.bf16.mxu0 0
      %1583 = vmatpush2.bf16.msra.mxu0 0
      %1584 = vmatprep.subr.bf16.mxu0 0
      %1585 = vmatpush2.bf16.msra.mxu0 0
      %1586 = vmatprep.subr.bf16.mxu0 0
      %1587 = vmatpush2.bf16.msra.mxu0 0
      %1588 = vmatprep.subr.bf16.mxu0 0
      %1589 = vmatpush2.bf16.msra.mxu0 0
      %1590 = vmatprep.subr.bf16.mxu0 0
      %1591 = vmatpush2.bf16.msra.mxu0 0
      %1592 = vmatprep.subr.bf16.mxu0 0
      %1593 = vmatpush2.bf16.msra.mxu0 0
      %1594 = vmatprep.mubr.bf16.mxu0 0
      %1595 = vmatmul.mubr.bf16.gmra.mxu0 %v1561
      %v1596 = vpop.f32.mrf.mxu0
      %v1597 = vadd.f32 0.0, %v1596
      %v1598 = vpop.f32.mrf.mxu0
      %v1599 = vadd.f32 0.0, %v1598
      %v1600 = vpop.f32.mrf.mxu0
      %v1601 = vpop.f32.mrf.mxu0
      %1602 = vdwg.mxu0
      %1603 = vmatprep.subr.bf16.mxu0 %v557
      %1604 = vmatpush1.bf16.msra.mxu0 %v556
      %1605 = vmatprep.subr.bf16.mxu0 %v553
      %1606 = vmatpush1.bf16.msra.mxu0 %v552
      %1607 = vmatprep.subr.bf16.mxu0 %v549
      %1608 = vmatpush1.bf16.msra.mxu0 %v548
      %1609 = vmatprep.subr.bf16.mxu0 %v545
      %1610 = vmatpush1.bf16.msra.mxu0 %v544
      %1611 = vmatprep.subr.bf16.mxu0 %v541
      %1612 = vmatpush1.bf16.msra.mxu0 %v540
      %1613 = vmatprep.subr.bf16.mxu0 %v537
      %1614 = vmatpush1.bf16.msra.mxu0 %v536
      %1615 = vmatprep.subr.bf16.mxu0 %v533
      %1616 = vmatpush1.bf16.msra.mxu0 %v532
      %1617 = vmatprep.subr.bf16.mxu0 %v529
      %1618 = vmatpush1.bf16.msra.mxu0 %v528
      %1619 = vmatprep.subr.bf16.mxu0 0
      %1620 = vmatpush2.bf16.msra.mxu0 0
      %1621 = vmatprep.subr.bf16.mxu0 0
      %1622 = vmatpush2.bf16.msra.mxu0 0
      %1623 = vmatprep.subr.bf16.mxu0 0
      %1624 = vmatpush2.bf16.msra.mxu0 0
      %1625 = vmatprep.subr.bf16.mxu0 0
      %1626 = vmatpush2.bf16.msra.mxu0 0
      %1627 = vmatprep.subr.bf16.mxu0 0
      %1628 = vmatpush2.bf16.msra.mxu0 0
      %1629 = vmatprep.subr.bf16.mxu0 0
      %1630 = vmatpush2.bf16.msra.mxu0 0
      %1631 = vmatprep.subr.bf16.mxu0 0
      %1632 = vmatpush2.bf16.msra.mxu0 0
      %1633 = vmatprep.subr.bf16.mxu0 0
      %1634 = vmatpush2.bf16.msra.mxu0 0
      %1635 = vmatprep.mubr.bf16.mxu0 0
      %1636 = vmatmul.mubr.bf16.gmra.mxu0 %v1561
      %v1637 = vpop.f32.mrf.mxu0
      %v1638 = vadd.f32 0.0, %v1637
      %v1639 = vpop.f32.mrf.mxu0
      %v1640 = vadd.f32 0.0, %v1639
      %v1641 = vpop.f32.mrf.mxu0
      %v1642 = vpop.f32.mrf.mxu0
      %1643 = vdwg.mxu0
      %v1644 = vadd.f32 %v1557, %v1597
      %v1645 = vadd.f32 %v1558, %v1599
      %v1646 = vadd.f32 %v1559, %v1638
      %v1647 = vadd.f32 %v1560, %v1640
      %v1648 = vpack.c.bf16 %v1644, %v1644
      %v1649 = vpack.c.bf16 %v1645, %v1645
      %v1650 = vpack.c.bf16 %v1646, %v1646
      %v1651 = vpack.c.bf16 %v1647, %v1647
      %v1652 = vxor.u32 %v1648, 2147516416
      %v1654 = vmul.bf16 %v1652, 1069105081
      %v1655 = vpow.bf16.pop %v1654
      %v1656 = vadd.bf16 %v1655, 1065369472
      %v1657 = vrcp.bf16.pop %v1656
      %v1658 = vmul.bf16 1065369472, %v1657
      %v1659 = vunpack.c.l.bf16 %v1658
      %v1660 = vxor.u32 %v1649, 2147516416
      %v1662 = vmul.bf16 %v1660, 1069105081
      %v1663 = vpow.bf16.pop %v1662
      %v1664 = vadd.bf16 %v1663, 1065369472
      %v1665 = vrcp.bf16.pop %v1664
      %v1666 = vmul.bf16 1065369472, %v1665
      %v1667 = vunpack.c.l.bf16 %v1666
      %v1668 = vtanh.bf16.pop %v1650
      %v1669 = vunpack.c.l.bf16 %v1668
      %v1670 = vxor.u32 %v1651, 2147516416
      %v1672 = vmul.bf16 %v1670, 1069105081
      %v1673 = vpow.bf16.pop %v1672
      %v1674 = vadd.bf16 %v1673, 1065369472
      %v1675 = vrcp.bf16.pop %v1674
      %v1676 = vmul.bf16 1065369472, %v1675
      %v1677 = vunpack.c.l.bf16 %v1676
      %v1678 = vmul.f32 %v1667, %v1553
      %v1679 = vmul.f32 %v1659, %v1669
      %v1680 = vadd.f32 %v1678, %v1679
      %v1681 = vtanh.pop %v1680
      %v1682 = vmul.f32 %v1677, %v1681
      %s1683 = sadd.s32 %s92, 7
      %v1684 = vstv %s1683
      %vm1685 = vcmp.lt.s32.totalorder %v1684, %v387
      %v1686 = vsel %vm1685, 1, 0
      %1687 = vset.pattern.permute.xlu0 0
      %1688 = vperm.xlu0 %1687, %v1686
      %v1689 = vpop.permute.xlu0 %1688
      %vm1690 = vcmp.eq.s32.totalorder %v1689, 1
      %v1691 = vsel %vm1690, %v1682, %v1552
      %v1692 = vsel %vm1690, %v1680, %v1553
      %1693 = vst [vmem:[#allocation3] sm:$0xff] %v1691
      %1694 = vst [vmem:[#allocation4] sm:$0xff] %v1692
    $region53: #{tpu_custom_call.1} parent=1 // pred_fallthru
      _
    // Predicated region
    $region54: #{tpu_custom_call.1} parent=1 // pred_check
      %p1695 = pneg %p86
    $region55: #{tpu_custom_call.1} parent=1 // pred_check_branch
      %1697 = sbr.rel (%p1695) target = $region57
    $region56: #{tpu_custom_call.1} parent=1 // pred_region
      %v1698 = vld [vmem:[#allocation3] sm:$0xff]
      %v1699 = vpack.c.bf16 %v1698, %v1698
      %v1700 = vld [vmem:[#allocation13] sm:$0xf]
      %v1701 = vld [vmem:[#allocation13 + $0x4] sm:$0xf]
      %v1702 = vld [vmem:[#allocation13 + $0x8] sm:$0xf]
      %v1703 = vld [vmem:[#allocation13 + $0xc] sm:$0xf]
      %v1704 = vld [vmem:[#allocation13 + $0x10] sm:$0xf]
      %v1705 = vld [vmem:[#allocation13 + $0x14] sm:$0xf]
      %v1706 = vld [vmem:[#allocation13 + $0x18] sm:$0xf]
      %v1707 = vld [vmem:[#allocation13 + $0x1c] sm:$0xf]
      %v1708 = vld [vmem:[#allocation13 + $0x20] sm:$0xf]
      %v1709 = vld [vmem:[#allocation13 + $0x24] sm:$0xf]
      %v1710 = vld [vmem:[#allocation13 + $0x28] sm:$0xf]
      %v1711 = vld [vmem:[#allocation13 + $0x2c] sm:$0xf]
      %v1712 = vld [vmem:[#allocation13 + $0x30] sm:$0xf]
      %v1713 = vld [vmem:[#allocation13 + $0x34] sm:$0xf]
      %v1714 = vld [vmem:[#allocation13 + $0x38] sm:$0xf]
      %v1715 = vld [vmem:[#allocation13 + $0x3c] sm:$0xf]
      %v1716 = vld [vmem:[%s7] sm:$0x1]
      %v1718 = vlaneseq
      %v1719 = vshrl.u32 %v1718, 7
      %v1720 = vsub.s32 0, %v1719
      %v1721 = vrot.slane %v1716, %v1720
      %v1739 = vunpack.c.l.b16 %v1700
      %v1740 = vunpack.c.l.b16 %v1701
      %v1741 = vunpack.c.l.b16 %v1702
      %v1742 = vunpack.c.l.b16 %v1703
      %v1743 = vunpack.c.l.b16 %v1704
      %v1744 = vunpack.c.l.b16 %v1705
      %v1745 = vunpack.c.l.b16 %v1706
      %v1746 = vunpack.c.l.b16 %v1707
      %v1747 = vunpack.c.l.b16 %v1708
      %v1748 = vunpack.c.l.b16 %v1709
      %v1749 = vunpack.c.l.b16 %v1710
      %v1750 = vunpack.c.l.b16 %v1711
      %v1751 = vunpack.c.l.b16 %v1712
      %v1752 = vunpack.c.l.b16 %v1713
      %v1753 = vunpack.c.l.b16 %v1714
      %v1754 = vunpack.c.l.b16 %v1715
      %v1755 = vpack.c.b16 %v1740, %v1739
      %v1756 = vpack.c.b16 %v1742, %v1741
      %v1757 = vpack.c.b16 %v1744, %v1743
      %v1758 = vpack.c.b16 %v1746, %v1745
      %v1759 = vpack.c.b16 %v1748, %v1747
      %v1760 = vpack.c.b16 %v1750, %v1749
      %v1761 = vpack.c.b16 %v1752, %v1751
      %v1762 = vpack.c.b16 %v1754, %v1753
      %1771 = vmatprep.subr.bf16.mxu0 0
      %1772 = vmatpush1.bf16.msra.mxu0 %v1762
      %1773 = vmatprep.subr.bf16.mxu0 0
      %1774 = vmatpush1.bf16.msra.mxu0 %v1761
      %1775 = vmatprep.subr.bf16.mxu0 0
      %1776 = vmatpush1.bf16.msra.mxu0 %v1760
      %1777 = vmatprep.subr.bf16.mxu0 0
      %1778 = vmatpush1.bf16.msra.mxu0 %v1759
      %1779 = vmatprep.subr.bf16.mxu0 0
      %1780 = vmatpush1.bf16.msra.mxu0 %v1758
      %1781 = vmatprep.subr.bf16.mxu0 0
      %1782 = vmatpush1.bf16.msra.mxu0 %v1757
      %1783 = vmatprep.subr.bf16.mxu0 0
      %1784 = vmatpush1.bf16.msra.mxu0 %v1756
      %1785 = vmatprep.subr.bf16.mxu0 0
      %1786 = vmatpush1.bf16.msra.mxu0 %v1755
      %1787 = vmatprep.subr.bf16.mxu0 0
      %1788 = vmatpush2.bf16.msra.mxu0 0
      %1789 = vmatprep.subr.bf16.mxu0 0
      %1790 = vmatpush2.bf16.msra.mxu0 0
      %1791 = vmatprep.subr.bf16.mxu0 0
      %1792 = vmatpush2.bf16.msra.mxu0 0
      %1793 = vmatprep.subr.bf16.mxu0 0
      %1794 = vmatpush2.bf16.msra.mxu0 0
      %1795 = vmatprep.subr.bf16.mxu0 0
      %1796 = vmatpush2.bf16.msra.mxu0 0
      %1797 = vmatprep.subr.bf16.mxu0 0
      %1798 = vmatpush2.bf16.msra.mxu0 0
      %1799 = vmatprep.subr.bf16.mxu0 0
      %1800 = vmatpush2.bf16.msra.mxu0 0
      %1801 = vmatprep.subr.bf16.mxu0 0
      %1802 = vmatpush2.bf16.msra.mxu0 0
      %1803 = vmatprep.mubr.bf16.mxu0 0
      %1804 = vmatmul.mubr.bf16.gmra.mxu0 %v1699
      %v1805 = vpop.f32.mrf.mxu0
      %v1806 = vadd.f32 %v1721, %v1805
      %v1807 = vpop.f32.mrf.mxu0
      %v1808 = vpop.f32.mrf.mxu0
      %v1809 = vpop.f32.mrf.mxu0
      %1810 = vdwg.mxu0
      %1811 = vst [vmem:[#allocation15] sm:$0xff] %v1806
    $region57: #{tpu_custom_call.1} parent=1 // pred_fallthru
      _
    // Predicated region
    $region58: #{tpu_custom_call.1} parent=1 // pred_check
      _
    $region59: #{tpu_custom_call.1} parent=1 // pred_check_branch
      %1813 = sbr.rel (0) target = $region61
    $region60: #{tpu_custom_call.1} parent=1 // pred_region
      %s1815 = ssub.s32 128, 128
      %1816 = vsyncadd [#allocation9], %s1815
      %s1818 = sshll.u32 [#allocation15], 4
      %s1819 = int_to_ptr.vmem [resolvable:$true] %s1818
      %1821 = dma.vmem_to_hbm [thread:$0]  %s1819, 128, %s8, [#allocation9]
    $region61: #{tpu_custom_call.1} parent=1 // pred_fallthru
      _
    // Predicated region
    $region62: #{tpu_custom_call.1} parent=1 // pred_check
      _
    $region63: #{tpu_custom_call.1} parent=1 // pred_check_branch
      %1823 = sbr.rel (0) target = $region65
    $region64: #{tpu_custom_call.1} parent=1 // pred_region
      %1824 = dma.done [#allocation9], 128
    $region65: #{tpu_custom_call.1} parent=1 // pred_fallthru
      _
    %1825 = vsyncpa [#allocation8], 1
    %1826 = vsyncpa [#allocation11], 1
    %1827 = vsyncpa [#allocation14], 1
    %1828 = vsyncpa [#allocation9], 1

</llo_original>
